<compile_context>
chip_gen: v6e
topology: v6e:2x2x1
jax: 0.10.0
libtpu: 0.0.40
codegen_flags: <defaults>
</compile_context>

<pallas_src>
import functools
import math

import jax
import jax.numpy as jnp
import numpy as np
from jax.experimental import pallas as pl
from jax.experimental.pallas import tpu as pltpu


def _round_up(v, m):
    return (v + m - 1) // m * m


def _vmem_limit_bytes():
    """Generation-aware VMEM limit: <=48 MiB on 64-MiB chips (v7x), up to
    96 MiB on 128-MiB chips (v5e/v6e)."""
    cap = 64 * 1024 * 1024
    try:
        cap = int(pltpu.get_tpu_info().vmem_capacity_bytes)
    except Exception:
        pass
    return max(32 * 1024 * 1024, min(cap * 3 // 4, 96 * 1024 * 1024))


def _pick_tile(tm_req, M, in_feat, n_children, hidden_pad, out_feat, cbytes,
               h_bytes, budget_bytes):
    """Largest row tile (multiple of 16 for bf16 sublane packing) that fits the
    VMEM budget; prefer >=4 grid steps for 2-TensorCore load balance."""
    total_out = n_children * out_feat
    tm = max(16, min(_round_up(tm_req, 16), _round_up(M, 16)))
    # Weights/bias are grid-invariant and single-buffered (pl.Buffered(1)).
    weight_bytes = (in_feat * out_feat + in_feat * n_children * hidden_pad
                    + hidden_pad * out_feat) * cbytes + out_feat * 4

    def fits(t):
        io = 2 * t * in_feat * cbytes + 2 * t * total_out * 4     # dbl-buffered x / out
        live = (t * n_children * hidden_pad * h_bytes             # H (largest temp)
                + t * (total_out + 2 * out_feat) * 4)             # root_b + child out + packed
        return weight_bytes + io + live <= budget_bytes

    while tm > 16 and not fits(tm):
        tm = max(16, ((tm // 2) + 15) // 16 * 16)
    # Prefer >= 4 parallel grid steps when M is big enough (v7x has 2 TCs).
    while tm > 128 and pl.cdiv(M, tm) < 4:
        tm = max(128, ((tm // 2) + 15) // 16 * 16)
    return tm


def _tree_gcn_kernel(x_ref, w_root_ref, w_all_ref, w_loop2_ref, bias_ref,
                     out_ref, *, n_children, hidden_pad, activation, h_dtype):
    """One row tile: x (tm, in_feat) -> out (tm, n_children*out_feat), packed."""
    x = x_ref[...]                                               # (tm, in_feat)
    # Root transform + bias (shared by all children of a node), hoisted once.
    root_b = (jnp.dot(x, w_root_ref[...], preferred_element_type=jnp.float32)
              + bias_ref[...])                                   # (tm, out_feat) f32

    # One wide matmul for every child's first Linear (W_branch pre-fused into
    # W_loop1): N = n_children*hidden_pad amortizes MXU fill/drain.
    h = jnp.dot(x, w_all_ref[...], preferred_element_type=h_dtype)
    h = jnp.where(h > 0, h, h * 0.2)                             # LeakyReLU(0.2)

    w2 = w_loop2_ref[...]                                        # (hidden_pad, out_feat)
    outs = []
    # TODO(synk): for very high degree (>= ~8, e.g. a final degree=64 layer)
    # this child loop should move onto a grid axis; the per-layer degrees used
    # here are small so static unrolling keeps W_loop2 held on the MXU.
    for d in range(n_children):
        h_d = h[:, d * hidden_pad:(d + 1) * hidden_pad]          # 128-aligned slice
        loop = jnp.dot(h_d, w2, preferred_element_type=jnp.float32)
        out = root_b + loop
        if activation:
            out = jnp.where(out > 0, out, 0.2 * out)
        outs.append(out)
    packed = outs[0] if n_children == 1 else jnp.concatenate(outs, axis=1)
    out_ref[...] = packed.astype(out_ref.dtype)                  # one packed store


def tree_gcn_layer(x, params, *, degree, upsample=True, activation=True,
                   tm=512, compute_dtype=jnp.bfloat16):
    """Pallas implementation of TreeGCNLayer.forward.

    x: (B, old_num, in_feat) float32
    params: dict with 'w_root' (in,out), 'w_loop1' (in, in*support),
            'w_loop2' (in*support, out), 'bias' (1,out),
            and (if upsample and degree>1) 'w_branch' (in, in*degree).
    """
    B, old_num, in_feat = x.shape
    out_feat = params["w_root"].shape[1]
    hidden = params["w_loop1"].shape[1]
    use_branch = upsample and degree > 1
    n_children = degree if use_branch else 1
    hidden_pad = _round_up(hidden, 128)
    total_out = n_children * out_feat

    # ---- weight preparation (f32 math, then one cast to compute dtype) ----
    if use_branch:
        # Fuse W_branch (per-child slice) into W_loop1: no nonlinearity between
        # them, so (x @ Wb_d) @ Wl1 == x @ (Wb_d @ Wl1).
        wb = params["w_branch"].reshape(in_feat, degree, in_feat)
        w_all = jnp.einsum("idk,kh->idh", wb, params["w_loop1"],
                           precision=jax.lax.Precision.HIGHEST)   # (in, deg, hid)
    else:
        w_all = params["w_loop1"][:, None, :]
    # Pack children along lanes; hidden padded to a 128 multiple so the
    # per-child lane slice in the kernel stays vreg aligned.
    w_all = jnp.pad(w_all, ((0, 0), (0, 0), (0, hidden_pad - hidden)))
    w_all = w_all.reshape(in_feat, n_children * hidden_pad)
    w_loop2 = jnp.pad(params["w_loop2"], ((0, hidden_pad - hidden), (0, 0)))
    w_root = params["w_root"]
    bias = params["bias"].astype(jnp.float32)

    w_root = w_root.astype(compute_dtype)
    w_all = w_all.astype(compute_dtype)
    w_loop2 = w_loop2.astype(compute_dtype)
    # Keep the big intermediate H in the compute dtype (bf16 halves its
    # VMEM/vreg footprint; the MXU still accumulates in f32 internally).
    h_dtype = jnp.float32 if compute_dtype == jnp.float32 else compute_dtype

    # ---- rows: flatten, pick a generation-aware tile, pad ragged M ----
    M = B * old_num
    cbytes = jnp.dtype(compute_dtype).itemsize
    h_bytes = jnp.dtype(h_dtype).itemsize
    vmem_limit = _vmem_limit_bytes()
    tm = _pick_tile(tm, M, in_feat, n_children, hidden_pad, out_feat,
                    cbytes, h_bytes, budget_bytes=int(vmem_limit * 0.85))
    M_pad = _round_up(M, tm)
    x2 = x.reshape(M, in_feat).astype(compute_dtype)
    if M_pad != M:
        x2 = jnp.pad(x2, ((0, M_pad - M), (0, 0)))

    kernel = functools.partial(_tree_gcn_kernel, n_children=n_children,
                               hidden_pad=hidden_pad, activation=activation,
                               h_dtype=h_dtype)

    flops = (2 * M_pad * in_feat * (out_feat + n_children * hidden_pad)
             + 2 * M_pad * n_children * hidden_pad * out_feat)
    bytes_accessed = (M_pad * in_feat * cbytes
                      + (w_root.size + w_all.size + w_loop2.size) * cbytes
                      + bias.size * 4 + M_pad * total_out * 4)
    cost = pl.CostEstimate(flops=flops, transcendentals=0,
                           bytes_accessed=bytes_accessed)

    def _call(single_buffer_weights):
        def w_spec(shape):
            # Grid-invariant operand -> keep a single resident copy in VMEM.
            if single_buffer_weights:
                return pl.BlockSpec(shape, lambda i: (0, 0),
                                    pipeline_mode=pl.Buffered(1))
            return pl.BlockSpec(shape, lambda i: (0, 0))

        return pl.pallas_call(
            kernel,
            out_shape=jax.ShapeDtypeStruct((M_pad, total_out), jnp.float32),
            grid_spec=pltpu.PrefetchScalarGridSpec(
                num_scalar_prefetch=0,
                grid=(M_pad // tm,),
                in_specs=[
                    pl.BlockSpec((tm, in_feat), lambda i: (i, 0)),
                    w_spec(w_root.shape),
                    w_spec(w_all.shape),
                    w_spec(w_loop2.shape),
                    w_spec(bias.shape),
                ],
                # Packed, lane-dense output block: last dim equals the full
                # array dim, so no per-child 128 padding is needed.
                out_specs=pl.BlockSpec((tm, total_out), lambda i: (i, 0)),
            ),
            compiler_params=pltpu.CompilerParams(
                dimension_semantics=("parallel",),
                vmem_limit_bytes=vmem_limit),
            cost_estimate=cost,
        )(x2, w_root, w_all, w_loop2, bias)

    try:
        out = _call(True)
    except Exception:
        # pl.Buffered(1) single-buffering unsupported on this jax version.
        out = _call(False)

    # Children are packed contiguously in the lane dim, so this is exactly
    # PyTorch's (B, old_num, degree, out) -> (B, old_num*degree, out)
    # interleave and costs no data movement.
    return out[:M].reshape(B, old_num * n_children, out_feat)


def tree_gcn_ref(x, params, *, degree, upsample=True, activation=True):
    """Pure-JAX reference (mirrors the PyTorch forward, unfused, HIGHEST prec)."""
    B, N, F = x.shape
    out_feat = params["w_root"].shape[1]
    mm = functools.partial(jnp.matmul, precision=jax.lax.Precision.HIGHEST)

    def w_loop(z):
        h = mm(z, params["w_loop1"])
        h = jnp.where(h > 0, h, 0.2 * h)
        return mm(h, params["w_loop2"])

    root = mm(x, params["w_root"])
    if upsample and degree > 1:
        branch = mm(x, params["w_branch"]).reshape(B, N * degree, F)
        branch = w_loop(branch)
        root = jnp.broadcast_to(root[:, :, None, :],
                                (B, N, degree, out_feat)).reshape(B, N * degree, out_feat)
        combined = root + branch
    else:
        combined = root + w_loop(x)
    out = combined + params["bias"]
    if activation:
        out = jnp.where(out > 0, out, 0.2 * out)
    return out


def init_params(key, in_feat, out_feat, degree, support, upsample):
    """Deterministic synthetic init (shapes follow TreeGCNLayer.__init__)."""
    ks = jax.random.split(key, 5)
    scale = 0.1
    params = {
        "w_root": scale * jax.random.normal(ks[0], (in_feat, out_feat), jnp.float32),
        "w_loop1": scale * jax.random.normal(ks[1], (in_feat, in_feat * support), jnp.float32),
        "w_loop2": scale * jax.random.normal(ks[2], (in_feat * support, out_feat), jnp.float32),
        "bias": jax.random.uniform(ks[3], (1, out_feat), jnp.float32,
                                   minval=-1.0 / math.sqrt(out_feat),
                                   maxval=1.0 / math.sqrt(out_feat)),
    }
    if upsample and degree > 1:
        params["w_branch"] = scale * jax.random.normal(
            ks[4], (in_feat, in_feat * degree), jnp.float32)
    # TODO(synk): spectral_norm is imported but never applied in this module's
    # __init__/forward, so there is nothing to translate for it here.
    return params


if __name__ == "__main__":
    key = jax.random.PRNGKey(0)
    kx, kp1, kp2 = jax.random.split(key, 3)

    B, old_num, in_feat, out_feat = 2, 8, 32, 64
    support = 10

    x = jax.random.normal(kx, (B, old_num, in_feat), jnp.float32)

    # case 1: upsampling layer (degree > 1); f32 compute path for a tight check.
    degree = 2
    params = init_params(kp1, in_feat, out_feat, degree, support, upsample=True)
    ref = tree_gcn_ref(x, params, degree=degree, upsample=True, activation=True)

    out_f32 = tree_gcn_layer(x, params, degree=degree, upsample=True,
                             activation=True, compute_dtype=jnp.float32)
    out_f32 = jax.block_until_ready(out_f32)
    assert out_f32.shape == (B, old_num * degree, out_feat)
    np.testing.assert_allclose(np.asarray(out_f32), np.asarray(ref),
                               rtol=5e-3, atol=5e-3)

    # same layer on the default bf16 (MXU-friendly) compute path.
    out_bf16 = tree_gcn_layer(x, params, degree=degree, upsample=True,
                              activation=True)
    out_bf16 = jax.block_until_ready(out_bf16)
    assert out_bf16.shape == (B, old_num * degree, out_feat)
    np.testing.assert_allclose(np.asarray(out_bf16), np.asarray(ref),
                               rtol=5e-2, atol=5e-2)

    # case 2: non-upsampling transform (degree == 1 -> root + W_loop(x)).
    params1 = init_params(kp2, in_feat, out_feat, 1, support, upsample=True)
    ref1 = tree_gcn_ref(x, params1, degree=1, upsample=True, activation=True)
    out1 = tree_gcn_layer(x, params1, degree=1, upsample=True,
                          activation=True, compute_dtype=jnp.float32)
    out1 = jax.block_until_ready(out1)
    assert out1.shape == (B, old_num, out_feat)
    np.testing.assert_allclose(np.asarray(out1), np.asarray(ref1),
                               rtol=5e-3, atol=5e-3)

    print("KERNEL_OK")
</pallas_src>

<mosaic_0001>
module attributes {stable_mosaic.version = 11 : i64} {
  func.func @_tree_gcn_kernel(%arg0: i32, %arg1: memref<16x32xf32, #tpu.memory_space<vmem>>, %arg2: memref<32x64xf32, #tpu.memory_space<vmem>>, %arg3: memref<32x768xf32, #tpu.memory_space<vmem>>, %arg4: memref<384x64xf32, #tpu.memory_space<vmem>>, %arg5: memref<1x64xf32, #tpu.memory_space<vmem>>, %arg6: memref<16x128xf32, #tpu.memory_space<vmem>>) attributes {dimension_semantics = [#tpu.dimension_semantics<parallel>], iteration_bounds = array<i64: 1>, scalar_prefetch = 0 : i64, scratch_operands = 0 : i64, tpu.core_type = #tpu.core_type<tc>, window_params = [{transform_indices = @transform_0, window_bounds = array<i64: 16, 32>}, {pipeline_mode = #tpu.pipeline_mode<synchronous>, transform_indices = @transform_1, window_bounds = array<i64: 32, 64>}, {pipeline_mode = #tpu.pipeline_mode<synchronous>, transform_indices = @transform_2, window_bounds = array<i64: 32, 768>}, {pipeline_mode = #tpu.pipeline_mode<synchronous>, transform_indices = @transform_3, window_bounds = array<i64: 384, 64>}, {pipeline_mode = #tpu.pipeline_mode<synchronous>, transform_indices = @transform_4, window_bounds = array<i64: 1, 64>}, {transform_indices = @transform_5, window_bounds = array<i64: 16, 128>}]} {
    %c0 = arith.constant 0 : index
    %c0_0 = arith.constant 0 : index
    %0 = vector.load %arg1[%c0, %c0_0] : memref<16x32xf32, #tpu.memory_space<vmem>>, vector<16x32xf32>
    %c0_1 = arith.constant 0 : index
    %c0_2 = arith.constant 0 : index
    %1 = vector.load %arg2[%c0_1, %c0_2] : memref<32x64xf32, #tpu.memory_space<vmem>>, vector<32x64xf32>
    %cst = arith.constant dense<0.000000e+00> : vector<16x64xf32>
    %2 = tpu.matmul %0, %1, %cst {dimension_numbers = #tpu.dot_dimension_numbers<[1], [0], [0], [1], [0, 0, 1, 1], [], []>} : vector<16x32xf32>, vector<32x64xf32>, vector<16x64xf32> -> vector<16x64xf32>
    %c0_3 = arith.constant 0 : index
    %c0_4 = arith.constant 0 : index
    %3 = vector.load %arg5[%c0_3, %c0_4] : memref<1x64xf32, #tpu.memory_space<vmem>>, vector<1x64xf32>
    %4 = vector.broadcast %3 : vector<1x64xf32> to vector<16x64xf32>
    %5 = arith.addf %2, %4 : vector<16x64xf32>
    %c0_5 = arith.constant 0 : index
    %c0_6 = arith.constant 0 : index
    %6 = vector.load %arg3[%c0_5, %c0_6] : memref<32x768xf32, #tpu.memory_space<vmem>>, vector<32x768xf32>
    %cst_7 = arith.constant dense<0.000000e+00> : vector<16x768xf32>
    %7 = tpu.matmul %0, %6, %cst_7 {dimension_numbers = #tpu.dot_dimension_numbers<[1], [0], [0], [1], [0, 0, 1, 1], [], []>} : vector<16x32xf32>, vector<32x768xf32>, vector<16x768xf32> -> vector<16x768xf32>
    %cst_8 = arith.constant 0.000000e+00 : f32
    %8 = vector.broadcast %cst_8 : f32 to vector<16x768xf32>
    %9 = arith.cmpf ogt, %7, %8 : vector<16x768xf32>
    %cst_9 = arith.constant 2.000000e-01 : f32
    %10 = vector.broadcast %cst_9 : f32 to vector<16x768xf32>
    %11 = arith.mulf %7, %10 : vector<16x768xf32>
    %12 = arith.select %9, %7, %11 : vector<16x768xi1>, vector<16x768xf32>
    %c0_10 = arith.constant 0 : index
    %c0_11 = arith.constant 0 : index
    %13 = vector.load %arg4[%c0_10, %c0_11] : memref<384x64xf32, #tpu.memory_space<vmem>>, vector<384x64xf32>
    %14 = vector.extract_strided_slice %12 {offsets = [0, 0], sizes = [16, 384], strides = [1, 1]} : vector<16x768xf32> to vector<16x384xf32>
    %cst_12 = arith.constant dense<0.000000e+00> : vector<16x64xf32>
    %15 = tpu.matmul %14, %13, %cst_12 {dimension_numbers = #tpu.dot_dimension_numbers<[1], [0], [0], [1], [0, 0, 1, 1], [], []>} : vector<16x384xf32>, vector<384x64xf32>, vector<16x64xf32> -> vector<16x64xf32>
    %16 = arith.addf %5, %15 : vector<16x64xf32>
    %cst_13 = arith.constant 0.000000e+00 : f32
    %17 = vector.broadcast %cst_13 : f32 to vector<16x64xf32>
    %18 = arith.cmpf ogt, %16, %17 : vector<16x64xf32>
    %cst_14 = arith.constant 2.000000e-01 : f32
    %19 = vector.broadcast %cst_14 : f32 to vector<16x64xf32>
    %20 = arith.mulf %19, %16 : vector<16x64xf32>
    %21 = arith.select %18, %16, %20 : vector<16x64xi1>, vector<16x64xf32>
    %22 = vector.extract_strided_slice %12 {offsets = [0, 384], sizes = [16, 384], strides = [1, 1]} : vector<16x768xf32> to vector<16x384xf32>
    %cst_15 = arith.constant dense<0.000000e+00> : vector<16x64xf32>
    %23 = tpu.matmul %22, %13, %cst_15 {dimension_numbers = #tpu.dot_dimension_numbers<[1], [0], [0], [1], [0, 0, 1, 1], [], []>} : vector<16x384xf32>, vector<384x64xf32>, vector<16x64xf32> -> vector<16x64xf32>
    %24 = arith.addf %5, %23 : vector<16x64xf32>
    %cst_16 = arith.constant 0.000000e+00 : f32
    %25 = vector.broadcast %cst_16 : f32 to vector<16x64xf32>
    %26 = arith.cmpf ogt, %24, %25 : vector<16x64xf32>
    %cst_17 = arith.constant 2.000000e-01 : f32
    %27 = vector.broadcast %cst_17 : f32 to vector<16x64xf32>
    %28 = arith.mulf %27, %24 : vector<16x64xf32>
    %29 = arith.select %26, %24, %28 : vector<16x64xi1>, vector<16x64xf32>
    %30 = tpu.concatenate %21, %29 in 1 : vector<16x64xf32>, vector<16x64xf32> -> vector<16x128xf32>
    %c0_18 = arith.constant 0 : index
    %c0_19 = arith.constant 0 : index
    %31 = vector.load %arg6[%c0_18, %c0_19] : memref<16x128xf32, #tpu.memory_space<vmem>>, vector<16x128xf32>
    tpu.vector_store %arg6[%c0_18, %c0_19], %30 {strides = array<i32>} : memref<16x128xf32, #tpu.memory_space<vmem>>, vector<16x128xf32>,
    return
  }
  func.func @transform_0(%arg0: i32) -> (i32, i32) {
    %c0_i32 = arith.constant 0 : i32
    %c0_i32_0 = arith.constant 0 : i32
    return %arg0, %c0_i32 : i32, i32
  }
  func.func @transform_1(%arg0: i32) -> (i32, i32) {
    %c0_i32 = arith.constant 0 : i32
    %c0_i32_0 = arith.constant 0 : i32
    %c0_i32_1 = arith.constant 0 : i32
    return %c0_i32, %c0_i32_0 : i32, i32
  }
  func.func @transform_2(%arg0: i32) -> (i32, i32) {
    %c0_i32 = arith.constant 0 : i32
    %c0_i32_0 = arith.constant 0 : i32
    %c0_i32_1 = arith.constant 0 : i32
    return %c0_i32, %c0_i32_0 : i32, i32
  }
  func.func @transform_3(%arg0: i32) -> (i32, i32) {
    %c0_i32 = arith.constant 0 : i32
    %c0_i32_0 = arith.constant 0 : i32
    %c0_i32_1 = arith.constant 0 : i32
    return %c0_i32, %c0_i32_0 : i32, i32
  }
  func.func @transform_4(%arg0: i32) -> (i32, i32) {
    %c0_i32 = arith.constant 0 : i32
    %c0_i32_0 = arith.constant 0 : i32
    %c0_i32_1 = arith.constant 0 : i32
    return %c0_i32, %c0_i32_0 : i32, i32
  }
  func.func @transform_5(%arg0: i32) -> (i32, i32) {
    %c0_i32 = arith.constant 0 : i32
    %c0_i32_0 = arith.constant 0 : i32
    return %arg0, %c0_i32 : i32, i32
  }
}

module attributes {stable_mosaic.version = 11 : i64} {
  func.func @_tree_gcn_kernel(%arg0: i32, %arg1: memref<16x32xf32, #tpu.memory_space<vmem>>, %arg2: memref<32x64xf32, #tpu.memory_space<vmem>>, %arg3: memref<32x768xf32, #tpu.memory_space<vmem>>, %arg4: memref<384x64xf32, #tpu.memory_space<vmem>>, %arg5: memref<1x64xf32, #tpu.memory_space<vmem>>, %arg6: memref<16x128xf32, #tpu.memory_space<vmem>>) attributes {dimension_semantics = [#tpu.dimension_semantics<parallel>], iteration_bounds = array<i64: 1>, scalar_prefetch = 0 : i64, scratch_operands = 0 : i64, tpu.core_type = #tpu.core_type<tc>, window_params = [{transform_indices = @transform_0, window_bounds = array<i64: 16, 32>}, {pipeline_mode = #tpu.pipeline_mode<synchronous>, transform_indices = @transform_1, window_bounds = array<i64: 32, 64>}, {pipeline_mode = #tpu.pipeline_mode<synchronous>, transform_indices = @transform_2, window_bounds = array<i64: 32, 768>}, {pipeline_mode = #tpu.pipeline_mode<synchronous>, transform_indices = @transform_3, window_bounds = array<i64: 384, 64>}, {pipeline_mode = #tpu.pipeline_mode<synchronous>, transform_indices = @transform_4, window_bounds = array<i64: 1, 64>}, {transform_indices = @transform_5, window_bounds = array<i64: 16, 128>}]} {
    %c0 = arith.constant 0 : index
    %c0_0 = arith.constant 0 : index
    %0 = vector.load %arg1[%c0, %c0_0] : memref<16x32xf32, #tpu.memory_space<vmem>>, vector<16x32xf32>
    %c0_1 = arith.constant 0 : index
    %c0_2 = arith.constant 0 : index
    %1 = vector.load %arg2[%c0_1, %c0_2] : memref<32x64xf32, #tpu.memory_space<vmem>>, vector<32x64xf32>
    %cst = arith.constant dense<0.000000e+00> : vector<16x64xf32>
    %2 = tpu.matmul %0, %1, %cst {dimension_numbers = #tpu.dot_dimension_numbers<[1], [0], [0], [1], [0, 0, 1, 1], [], []>} : vector<16x32xf32>, vector<32x64xf32>, vector<16x64xf32> -> vector<16x64xf32>
    %c0_3 = arith.constant 0 : index
    %c0_4 = arith.constant 0 : index
    %3 = vector.load %arg5[%c0_3, %c0_4] : memref<1x64xf32, #tpu.memory_space<vmem>>, vector<1x64xf32>
    %4 = vector.broadcast %3 : vector<1x64xf32> to vector<16x64xf32>
    %5 = arith.addf %2, %4 : vector<16x64xf32>
    %c0_5 = arith.constant 0 : index
    %c0_6 = arith.constant 0 : index
    %6 = vector.load %arg3[%c0_5, %c0_6] : memref<32x768xf32, #tpu.memory_space<vmem>>, vector<32x768xf32>
    %cst_7 = arith.constant dense<0.000000e+00> : vector<16x768xf32>
    %7 = tpu.matmul %0, %6, %cst_7 {dimension_numbers = #tpu.dot_dimension_numbers<[1], [0], [0], [1], [0, 0, 1, 1], [], []>} : vector<16x32xf32>, vector<32x768xf32>, vector<16x768xf32> -> vector<16x768xf32>
    %cst_8 = arith.constant 0.000000e+00 : f32
    %8 = vector.broadcast %cst_8 : f32 to vector<16x768xf32>
    %9 = arith.cmpf ogt, %7, %8 : vector<16x768xf32>
    %cst_9 = arith.constant 2.000000e-01 : f32
    %10 = vector.broadcast %cst_9 : f32 to vector<16x768xf32>
    %11 = arith.mulf %7, %10 : vector<16x768xf32>
    %12 = arith.select %9, %7, %11 : vector<16x768xi1>, vector<16x768xf32>
    %c0_10 = arith.constant 0 : index
    %c0_11 = arith.constant 0 : index
    %13 = vector.load %arg4[%c0_10, %c0_11] : memref<384x64xf32, #tpu.memory_space<vmem>>, vector<384x64xf32>
    %14 = vector.extract_strided_slice %12 {offsets = [0, 0], sizes = [16, 384], strides = [1, 1]} : vector<16x768xf32> to vector<16x384xf32>
    %cst_12 = arith.constant dense<0.000000e+00> : vector<16x64xf32>
    %15 = tpu.matmul %14, %13, %cst_12 {dimension_numbers = #tpu.dot_dimension_numbers<[1], [0], [0], [1], [0, 0, 1, 1], [], []>} : vector<16x384xf32>, vector<384x64xf32>, vector<16x64xf32> -> vector<16x64xf32>
    %16 = arith.addf %5, %15 : vector<16x64xf32>
    %cst_13 = arith.constant 0.000000e+00 : f32
    %17 = vector.broadcast %cst_13 : f32 to vector<16x64xf32>
    %18 = arith.cmpf ogt, %16, %17 : vector<16x64xf32>
    %cst_14 = arith.constant 2.000000e-01 : f32
    %19 = vector.broadcast %cst_14 : f32 to vector<16x64xf32>
    %20 = arith.mulf %19, %16 : vector<16x64xf32>
    %21 = arith.select %18, %16, %20 : vector<16x64xi1>, vector<16x64xf32>
    %22 = vector.extract_strided_slice %12 {offsets = [0, 384], sizes = [16, 384], strides = [1, 1]} : vector<16x768xf32> to vector<16x384xf32>
    %cst_15 = arith.constant dense<0.000000e+00> : vector<16x64xf32>
    %23 = tpu.matmul %22, %13, %cst_15 {dimension_numbers = #tpu.dot_dimension_numbers<[1], [0], [0], [1], [0, 0, 1, 1], [], []>} : vector<16x384xf32>, vector<384x64xf32>, vector<16x64xf32> -> vector<16x64xf32>
    %24 = arith.addf %5, %23 : vector<16x64xf32>
    %cst_16 = arith.constant 0.000000e+00 : f32
    %25 = vector.broadcast %cst_16 : f32 to vector<16x64xf32>
    %26 = arith.cmpf ogt, %24, %25 : vector<16x64xf32>
    %cst_17 = arith.constant 2.000000e-01 : f32
    %27 = vector.broadcast %cst_17 : f32 to vector<16x64xf32>
    %28 = arith.mulf %27, %24 : vector<16x64xf32>
    %29 = arith.select %26, %24, %28 : vector<16x64xi1>, vector<16x64xf32>
    %30 = tpu.concatenate %21, %29 in 1 : vector<16x64xf32>, vector<16x64xf32> -> vector<16x128xf32>
    %c0_18 = arith.constant 0 : index
    %c0_19 = arith.constant 0 : index
    %31 = vector.load %arg6[%c0_18, %c0_19] : memref<16x128xf32, #tpu.memory_space<vmem>>, vector<16x128xf32>
    tpu.vector_store %arg6[%c0_18, %c0_19], %30 {strides = array<i32>} : memref<16x128xf32, #tpu.memory_space<vmem>>, vector<16x128xf32>,
    return
  }
  func.func @transform_0(%arg0: i32) -> (i32, i32) {
    %c0_i32 = arith.constant 0 : i32
    %c0_i32_0 = arith.constant 0 : i32
    return %arg0, %c0_i32 : i32, i32
  }
  func.func @transform_1(%arg0: i32) -> (i32, i32) {
    %c0_i32 = arith.constant 0 : i32
    %c0_i32_0 = arith.constant 0 : i32
    %c0_i32_1 = arith.constant 0 : i32
    return %c0_i32, %c0_i32_0 : i32, i32
  }
  func.func @transform_2(%arg0: i32) -> (i32, i32) {
    %c0_i32 = arith.constant 0 : i32
    %c0_i32_0 = arith.constant 0 : i32
    %c0_i32_1 = arith.constant 0 : i32
    return %c0_i32, %c0_i32_0 : i32, i32
  }
  func.func @transform_3(%arg0: i32) -> (i32, i32) {
    %c0_i32 = arith.constant 0 : i32
    %c0_i32_0 = arith.constant 0 : i32
    %c0_i32_1 = arith.constant 0 : i32
    return %c0_i32, %c0_i32_0 : i32, i32
  }
  func.func @transform_4(%arg0: i32) -> (i32, i32) {
    %c0_i32 = arith.constant 0 : i32
    %c0_i32_0 = arith.constant 0 : i32
    %c0_i32_1 = arith.constant 0 : i32
    return %c0_i32, %c0_i32_0 : i32, i32
  }
  func.func @transform_5(%arg0: i32) -> (i32, i32) {
    %c0_i32 = arith.constant 0 : i32
    %c0_i32_0 = arith.constant 0 : i32
    return %arg0, %c0_i32 : i32, i32
  }
}

</mosaic_0001>

<llo_original>
// kernel: tpu_custom_call.1
$region0: #{tpu_custom_call.1}
  #allocation0 [shape = 'u32[]', space=smem, size = 0x4, offset = 0x4, fixed_abs, tag = 'smem constant byte address 0x4 - core index']
  #allocation1 [shape = 'u32[144,128]{1,0:T(1,128)}', space=vmem, size = 0x12000, scoped, tag = 'internal scratch']
  %s0 = inlined_call_operand.vmem [shape: f32[16,32], index: 0, kind: input, shape index: {}]
  %s1 = inlined_call_operand.vmem [shape: f32[32,64], index: 1, kind: input, shape index: {}]
  %s2 = inlined_call_operand.vmem [shape: f32[32,768], index: 2, kind: input, shape index: {}]
  %s3 = inlined_call_operand.vmem [shape: f32[384,64], index: 3, kind: input, shape index: {}]
  %s4 = inlined_call_operand.vmem [shape: f32[1,64], index: 4, kind: input, shape index: {}]
  %s5 = inlined_call_operand.hbm [shape: f32[16,128], index: 5, kind: output, shape index: {}]
  %s6 = sld [smem:[#allocation0]]
  $region30: #{tpu_custom_call.1} parent=0
    _
  %s8 = ssub.s32 1, %s6
  %s9 = scalar_select 0, %s8, %s6
  $region1: #{tpu_custom_call.1} parent=0
    #allocation2 [shape = 'u8[8192]{0}', space=vmem, size = 0x2000, scoped, tag = 'output window, operand 0, single buffered']
    #allocation3 [shape = 's32[1]{0}', space=sflag, size = 0x4, scoped, tag = 'scoped memory for tpu_custom_call.1']
    %10 = vsyncpa [#allocation3], 0
    // Predicated region
    $region2: #{tpu_custom_call.1} parent=1 // pred_check
      _
    $region3: #{tpu_custom_call.1} parent=1 // pred_check_branch
      %12 = sbr.rel (0) target = $region5
    $region4: #{tpu_custom_call.1} parent=1 // pred_region
      _
    $region5: #{tpu_custom_call.1} parent=1 // pred_fallthru
      _
    // Predicated region
    $region6: #{tpu_custom_call.1} parent=1 // pred_check
      _
    $region7: #{tpu_custom_call.1} parent=1 // pred_check_branch
      %14 = sbr.rel (0) target = $region9
    $region8: #{tpu_custom_call.1} parent=1 // pred_region
      _
    $region9: #{tpu_custom_call.1} parent=1 // pred_fallthru
      _
    // Predicated region
    $region10: #{tpu_custom_call.1} parent=1 // pred_check
      _
    $region11: #{tpu_custom_call.1} parent=1 // pred_check_branch
      %16 = sbr.rel (0) target = $region13
    $region12: #{tpu_custom_call.1} parent=1 // pred_region
      _
    $region13: #{tpu_custom_call.1} parent=1 // pred_fallthru
      _
    // Predicated region
    $region14: #{tpu_custom_call.1} parent=1 // pred_check
      _
    $region15: #{tpu_custom_call.1} parent=1 // pred_check_branch
      %18 = sbr.rel (0) target = $region17
    $region16: #{tpu_custom_call.1} parent=1 // pred_region
      _
    $region17: #{tpu_custom_call.1} parent=1 // pred_fallthru
      _
    // Predicated region
    $region18: #{tpu_custom_call.1} parent=1 // pred_check
      _
    $region19: #{tpu_custom_call.1} parent=1 // pred_check_branch
      %20 = sbr.rel (0) target = $region21
    $region20: #{tpu_custom_call.1} parent=1 // pred_region
      _
    $region21: #{tpu_custom_call.1} parent=1 // pred_fallthru
      _
    %v21 = vld [vmem:[%s0] sm:$0xff]
    %v22 = vld [vmem:[%s0 + $0x8] sm:$0xff]
    %v23 = vld [vmem:[%s1] sm:$0xff]
    %v24 = vld [vmem:[%s1 + $0x8] sm:$0xff]
    %v25 = vld [vmem:[%s1 + $0x10] sm:$0xff]
    %v26 = vld [vmem:[%s1 + $0x18] sm:$0xff]
    %v27 = vld [vmem:[%s4] sm:$0x1]
    %v29 = vlaneseq
    %v30 = vshrl.u32 %v29, 7
    %v31 = vsub.s32 0, %v30
    %v32 = vrot.slane %v27, %v31
    %vm34 = vcmask 261120
    %v36 = vsel %vm34, %v21, 0
    %v39 = vsel %vm34, %v22, 0
    %41 = vmatprep.subr.mxu0 0.0
    %42 = vmatpush1.msra.mxu0 0.0
    %43 = vmatprep.subr.mxu0 0.0
    %44 = vmatpush1.msra.mxu0 0.0
    %45 = vmatprep.subr.mxu0 0.0
    %46 = vmatpush1.msra.mxu0 0.0
    %47 = vmatprep.subr.mxu0 0.0
    %48 = vmatpush1.msra.mxu0 0.0
    %49 = vmatprep.subr.mxu0 0.0
    %50 = vmatpush1.msra.mxu0 0.0
    %51 = vmatprep.subr.mxu0 0.0
    %52 = vmatpush1.msra.mxu0 0.0
    %53 = vmatprep.subr.mxu0 0.0
    %54 = vmatpush1.msra.mxu0 0.0
    %55 = vmatprep.subr.mxu0 0.0
    %56 = vmatpush1.msra.mxu0 0.0
    %57 = vmatprep.subr.mxu0 0.0
    %58 = vmatpush1.msra.mxu0 0.0
    %59 = vmatprep.subr.mxu0 0.0
    %60 = vmatpush1.msra.mxu0 0.0
    %61 = vmatprep.subr.mxu0 0.0
    %62 = vmatpush1.msra.mxu0 0.0
    %63 = vmatprep.subr.mxu0 0.0
    %64 = vmatpush1.msra.mxu0 0.0
    %65 = vmatprep.subr.mxu0 0.0
    %66 = vmatpush1.msra.mxu0 %v26
    %67 = vmatprep.subr.mxu0 0.0
    %68 = vmatpush1.msra.mxu0 %v25
    %69 = vmatprep.subr.mxu0 0.0
    %70 = vmatpush1.msra.mxu0 %v24
    %71 = vmatprep.subr.mxu0 0.0
    %72 = vmatpush1.msra.mxu0 %v23
    %73 = vmatprep.subr.mxu0 0.0
    %74 = vmatpush2.msra.mxu0 0.0
    %75 = vmatprep.subr.mxu0 0.0
    %76 = vmatpush2.msra.mxu0 0.0
    %77 = vmatprep.subr.mxu0 0.0
    %78 = vmatpush2.msra.mxu0 0.0
    %79 = vmatprep.subr.mxu0 0.0
    %80 = vmatpush2.msra.mxu0 0.0
    %81 = vmatprep.subr.mxu0 0.0
    %82 = vmatpush2.msra.mxu0 0.0
    %83 = vmatprep.subr.mxu0 0.0
    %84 = vmatpush2.msra.mxu0 0.0
    %85 = vmatprep.subr.mxu0 0.0
    %86 = vmatpush2.msra.mxu0 0.0
    %87 = vmatprep.subr.mxu0 0.0
    %88 = vmatpush2.msra.mxu0 0.0
    %89 = vmatprep.subr.mxu0 0.0
    %90 = vmatpush2.msra.mxu0 0.0
    %91 = vmatprep.subr.mxu0 0.0
    %92 = vmatpush2.msra.mxu0 0.0
    %93 = vmatprep.subr.mxu0 0.0
    %94 = vmatpush2.msra.mxu0 0.0
    %95 = vmatprep.subr.mxu0 0.0
    %96 = vmatpush2.msra.mxu0 0.0
    %97 = vmatprep.subr.mxu0 0.0
    %98 = vmatpush2.msra.mxu0 0.0
    %99 = vmatprep.subr.mxu0 0.0
    %100 = vmatpush2.msra.mxu0 0.0
    %101 = vmatprep.subr.mxu0 0.0
    %102 = vmatpush2.msra.mxu0 0.0
    %103 = vmatprep.subr.mxu0 0.0
    %104 = vmatpush2.msra.mxu0 0.0
    %105 = vmatprep.mubr.f32.mxu0 0.0
    %106 = vmatmul.mubr.f32.gmra.mxu0 %v36
    %v107 = vpop.f32.mrf.mxu0
    %v108 = vadd.f32 %v32, %v107
    %v109 = vpop.f32.mrf.mxu0
    %110 = vmatprep.mubr.f32.mxu0 0.0
    %111 = vmatmul.mubr.f32.gmra.mxu0 %v39
    %v112 = vpop.f32.mrf.mxu0
    %v113 = vadd.f32 %v32, %v112
    %v114 = vpop.f32.mrf.mxu0
    %115 = vdwg.mxu0
    %v116 = vld [vmem:[%s2] sm:$0xff]
    %v117 = vld [vmem:[%s2 + $0x8] sm:$0xff]
    %v118 = vld [vmem:[%s2 + $0x10] sm:$0xff]
    %v119 = vld [vmem:[%s2 + $0x18] sm:$0xff]
    %v120 = vld [vmem:[%s2 + $0x20] sm:$0xff]
    %v121 = vld [vmem:[%s2 + $0x28] sm:$0xff]
    %v122 = vld [vmem:[%s2 + $0x30] sm:$0xff]
    %v123 = vld [vmem:[%s2 + $0x38] sm:$0xff]
    %v124 = vld [vmem:[%s2 + $0x40] sm:$0xff]
    %v125 = vld [vmem:[%s2 + $0x48] sm:$0xff]
    %v126 = vld [vmem:[%s2 + $0x50] sm:$0xff]
    %v127 = vld [vmem:[%s2 + $0x58] sm:$0xff]
    %v128 = vld [vmem:[%s2 + $0x60] sm:$0xff]
    %v129 = vld [vmem:[%s2 + $0x68] sm:$0xff]
    %v130 = vld [vmem:[%s2 + $0x70] sm:$0xff]
    %v131 = vld [vmem:[%s2 + $0x78] sm:$0xff]
    %v132 = vld [vmem:[%s2 + $0x80] sm:$0xff]
    %v133 = vld [vmem:[%s2 + $0x88] sm:$0xff]
    %v134 = vld [vmem:[%s2 + $0x90] sm:$0xff]
    %v135 = vld [vmem:[%s2 + $0x98] sm:$0xff]
    %v136 = vld [vmem:[%s2 + $0xa0] sm:$0xff]
    %v137 = vld [vmem:[%s2 + $0xa8] sm:$0xff]
    %v138 = vld [vmem:[%s2 + $0xb0] sm:$0xff]
    %v139 = vld [vmem:[%s2 + $0xb8] sm:$0xff]
    %140 = vmatprep.subr.mxu0 0.0
    %141 = vmatpush1.msra.mxu0 0.0
    %142 = vmatprep.subr.mxu0 0.0
    %143 = vmatpush1.msra.mxu0 0.0
    %144 = vmatprep.subr.mxu0 0.0
    %145 = vmatpush1.msra.mxu0 0.0
    %146 = vmatprep.subr.mxu0 0.0
    %147 = vmatpush1.msra.mxu0 0.0
    %148 = vmatprep.subr.mxu0 0.0
    %149 = vmatpush1.msra.mxu0 0.0
    %150 = vmatprep.subr.mxu0 0.0
    %151 = vmatpush1.msra.mxu0 0.0
    %152 = vmatprep.subr.mxu0 0.0
    %153 = vmatpush1.msra.mxu0 0.0
    %154 = vmatprep.subr.mxu0 0.0
    %155 = vmatpush1.msra.mxu0 0.0
    %156 = vmatprep.subr.mxu0 0.0
    %157 = vmatpush1.msra.mxu0 0.0
    %158 = vmatprep.subr.mxu0 0.0
    %159 = vmatpush1.msra.mxu0 0.0
    %160 = vmatprep.subr.mxu0 0.0
    %161 = vmatpush1.msra.mxu0 0.0
    %162 = vmatprep.subr.mxu0 0.0
    %163 = vmatpush1.msra.mxu0 0.0
    %164 = vmatprep.subr.mxu0 %v135
    %165 = vmatpush1.msra.mxu0 %v134
    %166 = vmatprep.subr.mxu0 %v129
    %167 = vmatpush1.msra.mxu0 %v128
    %168 = vmatprep.subr.mxu0 %v123
    %169 = vmatpush1.msra.mxu0 %v122
    %170 = vmatprep.subr.mxu0 %v117
    %171 = vmatpush1.msra.mxu0 %v116
    %172 = vmatprep.subr.mxu0 0.0
    %173 = vmatpush2.msra.mxu0 0.0
    %174 = vmatprep.subr.mxu0 0.0
    %175 = vmatpush2.msra.mxu0 0.0
    %176 = vmatprep.subr.mxu0 0.0
    %177 = vmatpush2.msra.mxu0 0.0
    %178 = vmatprep.subr.mxu0 0.0
    %179 = vmatpush2.msra.mxu0 0.0
    %180 = vmatprep.subr.mxu0 0.0
    %181 = vmatpush2.msra.mxu0 0.0
    %182 = vmatprep.subr.mxu0 0.0
    %183 = vmatpush2.msra.mxu0 0.0
    %184 = vmatprep.subr.mxu0 0.0
    %185 = vmatpush2.msra.mxu0 0.0
    %186 = vmatprep.subr.mxu0 0.0
    %187 = vmatpush2.msra.mxu0 0.0
    %188 = vmatprep.subr.mxu0 0.0
    %189 = vmatpush2.msra.mxu0 0.0
    %190 = vmatprep.subr.mxu0 0.0
    %191 = vmatpush2.msra.mxu0 0.0
    %192 = vmatprep.subr.mxu0 0.0
    %193 = vmatpush2.msra.mxu0 0.0
    %194 = vmatprep.subr.mxu0 0.0
    %195 = vmatpush2.msra.mxu0 0.0
    %196 = vmatprep.subr.mxu0 0.0
    %197 = vmatpush2.msra.mxu0 0.0
    %198 = vmatprep.subr.mxu0 0.0
    %199 = vmatpush2.msra.mxu0 0.0
    %200 = vmatprep.subr.mxu0 0.0
    %201 = vmatpush2.msra.mxu0 0.0
    %202 = vmatprep.subr.mxu0 0.0
    %203 = vmatpush2.msra.mxu0 0.0
    %204 = vmatprep.mubr.f32.mxu0 0.0
    %205 = vmatmul.mubr.f32.gmra.mxu0 %v36
    %v206 = vpop.f32.mrf.mxu0
    %v207 = vadd.f32 0.0, %v206
    %v208 = vpop.f32.mrf.mxu0
    %v209 = vadd.f32 0.0, %v208
    %210 = vmatprep.mubr.f32.mxu0 0.0
    %211 = vmatmul.mubr.f32.gmra.mxu0 %v39
    %v212 = vpop.f32.mrf.mxu0
    %v213 = vadd.f32 0.0, %v212
    %v214 = vpop.f32.mrf.mxu0
    %v215 = vadd.f32 0.0, %v214
    %216 = vdwg.mxu0
    %217 = vmatprep.subr.mxu0 0.0
    %218 = vmatpush1.msra.mxu0 0.0
    %219 = vmatprep.subr.mxu0 0.0
    %220 = vmatpush1.msra.mxu0 0.0
    %221 = vmatprep.subr.mxu0 0.0
    %222 = vmatpush1.msra.mxu0 0.0
    %223 = vmatprep.subr.mxu0 0.0
    %224 = vmatpush1.msra.mxu0 0.0
    %225 = vmatprep.subr.mxu0 0.0
    %226 = vmatpush1.msra.mxu0 0.0
    %227 = vmatprep.subr.mxu0 0.0
    %228 = vmatpush1.msra.mxu0 0.0
    %229 = vmatprep.subr.mxu0 0.0
    %230 = vmatpush1.msra.mxu0 0.0
    %231 = vmatprep.subr.mxu0 0.0
    %232 = vmatpush1.msra.mxu0 0.0
    %233 = vmatprep.subr.mxu0 0.0
    %234 = vmatpush1.msra.mxu0 0.0
    %235 = vmatprep.subr.mxu0 0.0
    %236 = vmatpush1.msra.mxu0 0.0
    %237 = vmatprep.subr.mxu0 0.0
    %238 = vmatpush1.msra.mxu0 0.0
    %239 = vmatprep.subr.mxu0 0.0
    %240 = vmatpush1.msra.mxu0 0.0
    %241 = vmatprep.subr.mxu0 %v137
    %242 = vmatpush1.msra.mxu0 %v136
    %243 = vmatprep.subr.mxu0 %v131
    %244 = vmatpush1.msra.mxu0 %v130
    %245 = vmatprep.subr.mxu0 %v125
    %246 = vmatpush1.msra.mxu0 %v124
    %247 = vmatprep.subr.mxu0 %v119
    %248 = vmatpush1.msra.mxu0 %v118
    %249 = vmatprep.subr.mxu0 0.0
    %250 = vmatpush2.msra.mxu0 0.0
    %251 = vmatprep.subr.mxu0 0.0
    %252 = vmatpush2.msra.mxu0 0.0
    %253 = vmatprep.subr.mxu0 0.0
    %254 = vmatpush2.msra.mxu0 0.0
    %255 = vmatprep.subr.mxu0 0.0
    %256 = vmatpush2.msra.mxu0 0.0
    %257 = vmatprep.subr.mxu0 0.0
    %258 = vmatpush2.msra.mxu0 0.0
    %259 = vmatprep.subr.mxu0 0.0
    %260 = vmatpush2.msra.mxu0 0.0
    %261 = vmatprep.subr.mxu0 0.0
    %262 = vmatpush2.msra.mxu0 0.0
    %263 = vmatprep.subr.mxu0 0.0
    %264 = vmatpush2.msra.mxu0 0.0
    %265 = vmatprep.subr.mxu0 0.0
    %266 = vmatpush2.msra.mxu0 0.0
    %267 = vmatprep.subr.mxu0 0.0
    %268 = vmatpush2.msra.mxu0 0.0
    %269 = vmatprep.subr.mxu0 0.0
    %270 = vmatpush2.msra.mxu0 0.0
    %271 = vmatprep.subr.mxu0 0.0
    %272 = vmatpush2.msra.mxu0 0.0
    %273 = vmatprep.subr.mxu0 0.0
    %274 = vmatpush2.msra.mxu0 0.0
    %275 = vmatprep.subr.mxu0 0.0
    %276 = vmatpush2.msra.mxu0 0.0
    %277 = vmatprep.subr.mxu0 0.0
    %278 = vmatpush2.msra.mxu0 0.0
    %279 = vmatprep.subr.mxu0 0.0
    %280 = vmatpush2.msra.mxu0 0.0
    %281 = vmatprep.mubr.f32.mxu0 0.0
    %282 = vmatmul.mubr.f32.gmra.mxu0 %v36
    %v283 = vpop.f32.mrf.mxu0
    %v284 = vadd.f32 0.0, %v283
    %v285 = vpop.f32.mrf.mxu0
    %v286 = vadd.f32 0.0, %v285
    %287 = vmatprep.mubr.f32.mxu0 0.0
    %288 = vmatmul.mubr.f32.gmra.mxu0 %v39
    %v289 = vpop.f32.mrf.mxu0
    %v290 = vadd.f32 0.0, %v289
    %v291 = vpop.f32.mrf.mxu0
    %v292 = vadd.f32 0.0, %v291
    %293 = vdwg.mxu0
    %294 = vmatprep.subr.mxu0 0.0
    %295 = vmatpush1.msra.mxu0 0.0
    %296 = vmatprep.subr.mxu0 0.0
    %297 = vmatpush1.msra.mxu0 0.0
    %298 = vmatprep.subr.mxu0 0.0
    %299 = vmatpush1.msra.mxu0 0.0
    %300 = vmatprep.subr.mxu0 0.0
    %301 = vmatpush1.msra.mxu0 0.0
    %302 = vmatprep.subr.mxu0 0.0
    %303 = vmatpush1.msra.mxu0 0.0
    %304 = vmatprep.subr.mxu0 0.0
    %305 = vmatpush1.msra.mxu0 0.0
    %306 = vmatprep.subr.mxu0 0.0
    %307 = vmatpush1.msra.mxu0 0.0
    %308 = vmatprep.subr.mxu0 0.0
    %309 = vmatpush1.msra.mxu0 0.0
    %310 = vmatprep.subr.mxu0 0.0
    %311 = vmatpush1.msra.mxu0 0.0
    %312 = vmatprep.subr.mxu0 0.0
    %313 = vmatpush1.msra.mxu0 0.0
    %314 = vmatprep.subr.mxu0 0.0
    %315 = vmatpush1.msra.mxu0 0.0
    %316 = vmatprep.subr.mxu0 0.0
    %317 = vmatpush1.msra.mxu0 0.0
    %318 = vmatprep.subr.mxu0 %v139
    %319 = vmatpush1.msra.mxu0 %v138
    %320 = vmatprep.subr.mxu0 %v133
    %321 = vmatpush1.msra.mxu0 %v132
    %322 = vmatprep.subr.mxu0 %v127
    %323 = vmatpush1.msra.mxu0 %v126
    %324 = vmatprep.subr.mxu0 %v121
    %325 = vmatpush1.msra.mxu0 %v120
    %326 = vmatprep.subr.mxu0 0.0
    %327 = vmatpush2.msra.mxu0 0.0
    %328 = vmatprep.subr.mxu0 0.0
    %329 = vmatpush2.msra.mxu0 0.0
    %330 = vmatprep.subr.mxu0 0.0
    %331 = vmatpush2.msra.mxu0 0.0
    %332 = vmatprep.subr.mxu0 0.0
    %333 = vmatpush2.msra.mxu0 0.0
    %334 = vmatprep.subr.mxu0 0.0
    %335 = vmatpush2.msra.mxu0 0.0
    %336 = vmatprep.subr.mxu0 0.0
    %337 = vmatpush2.msra.mxu0 0.0
    %338 = vmatprep.subr.mxu0 0.0
    %339 = vmatpush2.msra.mxu0 0.0
    %340 = vmatprep.subr.mxu0 0.0
    %341 = vmatpush2.msra.mxu0 0.0
    %342 = vmatprep.subr.mxu0 0.0
    %343 = vmatpush2.msra.mxu0 0.0
    %344 = vmatprep.subr.mxu0 0.0
    %345 = vmatpush2.msra.mxu0 0.0
    %346 = vmatprep.subr.mxu0 0.0
    %347 = vmatpush2.msra.mxu0 0.0
    %348 = vmatprep.subr.mxu0 0.0
    %349 = vmatpush2.msra.mxu0 0.0
    %350 = vmatprep.subr.mxu0 0.0
    %351 = vmatpush2.msra.mxu0 0.0
    %352 = vmatprep.subr.mxu0 0.0
    %353 = vmatpush2.msra.mxu0 0.0
    %354 = vmatprep.subr.mxu0 0.0
    %355 = vmatpush2.msra.mxu0 0.0
    %356 = vmatprep.subr.mxu0 0.0
    %357 = vmatpush2.msra.mxu0 0.0
    %358 = vmatprep.mubr.f32.mxu0 0.0
    %359 = vmatmul.mubr.f32.gmra.mxu0 %v36
    %v360 = vpop.f32.mrf.mxu0
    %v361 = vadd.f32 0.0, %v360
    %v362 = vpop.f32.mrf.mxu0
    %v363 = vadd.f32 0.0, %v362
    %364 = vmatprep.mubr.f32.mxu0 0.0
    %365 = vmatmul.mubr.f32.gmra.mxu0 %v39
    %v366 = vpop.f32.mrf.mxu0
    %v367 = vadd.f32 0.0, %v366
    %v368 = vpop.f32.mrf.mxu0
    %v369 = vadd.f32 0.0, %v368
    %370 = vdwg.mxu0
    %vm371 = vcmp.gt.f32.partialorder %v207, 0.0
    %vm372 = vcmp.gt.f32.partialorder %v209, 0.0
    %vm373 = vcmp.gt.f32.partialorder %v284, 0.0
    %vm374 = vcmp.gt.f32.partialorder %v286, 0.0
    %vm375 = vcmp.gt.f32.partialorder %v361, 0.0
    %vm376 = vcmp.gt.f32.partialorder %v363, 0.0
    %vm377 = vcmp.gt.f32.partialorder %v213, 0.0
    %vm378 = vcmp.gt.f32.partialorder %v215, 0.0
    %vm379 = vcmp.gt.f32.partialorder %v290, 0.0
    %vm380 = vcmp.gt.f32.partialorder %v292, 0.0
    %vm381 = vcmp.gt.f32.partialorder %v367, 0.0
    %vm382 = vcmp.gt.f32.partialorder %v369, 0.0
    %v383 = vmul.f32 %v207, 0.2
    %v384 = vmul.f32 %v209, 0.2
    %v385 = vmul.f32 %v284, 0.2
    %v386 = vmul.f32 %v286, 0.2
    %v387 = vmul.f32 %v361, 0.2
    %v388 = vmul.f32 %v363, 0.2
    %v389 = vmul.f32 %v213, 0.2
    %v390 = vmul.f32 %v215, 0.2
    %v391 = vmul.f32 %v290, 0.2
    %v392 = vmul.f32 %v292, 0.2
    %v393 = vmul.f32 %v367, 0.2
    %v394 = vmul.f32 %v369, 0.2
    %v395 = vsel %vm371, %v207, %v383
    %v396 = vsel %vm372, %v209, %v384
    %v397 = vsel %vm373, %v284, %v385
    %v398 = vsel %vm374, %v286, %v386
    %v399 = vsel %vm375, %v361, %v387
    %v400 = vsel %vm376, %v363, %v388
    %v401 = vsel %vm377, %v213, %v389
    %v402 = vsel %vm378, %v215, %v390
    %v403 = vsel %vm379, %v290, %v391
    %v404 = vsel %vm380, %v292, %v392
    %v405 = vsel %vm381, %v367, %v393
    %v406 = vsel %vm382, %v369, %v394
    %v407 = vld [vmem:[%s3] sm:$0xff]
    %v408 = vld [vmem:[%s3 + $0x8] sm:$0xff]
    %v409 = vld [vmem:[%s3 + $0x10] sm:$0xff]
    %v410 = vld [vmem:[%s3 + $0x18] sm:$0xff]
    %v411 = vld [vmem:[%s3 + $0x20] sm:$0xff]
    %v412 = vld [vmem:[%s3 + $0x28] sm:$0xff]
    %v413 = vld [vmem:[%s3 + $0x30] sm:$0xff]
    %v414 = vld [vmem:[%s3 + $0x38] sm:$0xff]
    %v415 = vld [vmem:[%s3 + $0x40] sm:$0xff]
    %v416 = vld [vmem:[%s3 + $0x48] sm:$0xff]
    %v417 = vld [vmem:[%s3 + $0x50] sm:$0xff]
    %v418 = vld [vmem:[%s3 + $0x58] sm:$0xff]
    %v419 = vld [vmem:[%s3 + $0x60] sm:$0xff]
    %v420 = vld [vmem:[%s3 + $0x68] sm:$0xff]
    %v421 = vld [vmem:[%s3 + $0x70] sm:$0xff]
    %v422 = vld [vmem:[%s3 + $0x78] sm:$0xff]
    %v423 = vld [vmem:[%s3 + $0x80] sm:$0xff]
    %v424 = vld [vmem:[%s3 + $0x88] sm:$0xff]
    %v425 = vld [vmem:[%s3 + $0x90] sm:$0xff]
    %v426 = vld [vmem:[%s3 + $0x98] sm:$0xff]
    %v427 = vld [vmem:[%s3 + $0xa0] sm:$0xff]
    %v428 = vld [vmem:[%s3 + $0xa8] sm:$0xff]
    %v429 = vld [vmem:[%s3 + $0xb0] sm:$0xff]
    %v430 = vld [vmem:[%s3 + $0xb8] sm:$0xff]
    %v431 = vld [vmem:[%s3 + $0xc0] sm:$0xff]
    %v432 = vld [vmem:[%s3 + $0xc8] sm:$0xff]
    %v433 = vld [vmem:[%s3 + $0xd0] sm:$0xff]
    %v434 = vld [vmem:[%s3 + $0xd8] sm:$0xff]
    %v435 = vld [vmem:[%s3 + $0xe0] sm:$0xff]
    %v436 = vld [vmem:[%s3 + $0xe8] sm:$0xff]
    %v437 = vld [vmem:[%s3 + $0xf0] sm:$0xff]
    %v438 = vld [vmem:[%s3 + $0xf8] sm:$0xff]
    %v439 = vld [vmem:[%s3 + $0x100] sm:$0xff]
    %v440 = vld [vmem:[%s3 + $0x108] sm:$0xff]
    %v441 = vld [vmem:[%s3 + $0x110] sm:$0xff]
    %v442 = vld [vmem:[%s3 + $0x118] sm:$0xff]
    %v443 = vld [vmem:[%s3 + $0x120] sm:$0xff]
    %v444 = vld [vmem:[%s3 + $0x128] sm:$0xff]
    %v445 = vld [vmem:[%s3 + $0x130] sm:$0xff]
    %v446 = vld [vmem:[%s3 + $0x138] sm:$0xff]
    %v447 = vld [vmem:[%s3 + $0x140] sm:$0xff]
    %v448 = vld [vmem:[%s3 + $0x148] sm:$0xff]
    %v449 = vld [vmem:[%s3 + $0x150] sm:$0xff]
    %v450 = vld [vmem:[%s3 + $0x158] sm:$0xff]
    %v451 = vld [vmem:[%s3 + $0x160] sm:$0xff]
    %v452 = vld [vmem:[%s3 + $0x168] sm:$0xff]
    %v453 = vld [vmem:[%s3 + $0x170] sm:$0xff]
    %v454 = vld [vmem:[%s3 + $0x178] sm:$0xff]
    %455 = vmatprep.subr.mxu0 0.0
    %456 = vmatpush1.msra.mxu0 %v422
    %457 = vmatprep.subr.mxu0 0.0
    %458 = vmatpush1.msra.mxu0 %v421
    %459 = vmatprep.subr.mxu0 0.0
    %460 = vmatpush1.msra.mxu0 %v420
    %461 = vmatprep.subr.mxu0 0.0
    %462 = vmatpush1.msra.mxu0 %v419
    %463 = vmatprep.subr.mxu0 0.0
    %464 = vmatpush1.msra.mxu0 %v418
    %465 = vmatprep.subr.mxu0 0.0
    %466 = vmatpush1.msra.mxu0 %v417
    %467 = vmatprep.subr.mxu0 0.0
    %468 = vmatpush1.msra.mxu0 %v416
    %469 = vmatprep.subr.mxu0 0.0
    %470 = vmatpush1.msra.mxu0 %v415
    %471 = vmatprep.subr.mxu0 0.0
    %472 = vmatpush1.msra.mxu0 %v414
    %473 = vmatprep.subr.mxu0 0.0
    %474 = vmatpush1.msra.mxu0 %v413
    %475 = vmatprep.subr.mxu0 0.0
    %476 = vmatpush1.msra.mxu0 %v412
    %477 = vmatprep.subr.mxu0 0.0
    %478 = vmatpush1.msra.mxu0 %v411
    %479 = vmatprep.subr.mxu0 0.0
    %480 = vmatpush1.msra.mxu0 %v410
    %481 = vmatprep.subr.mxu0 0.0
    %482 = vmatpush1.msra.mxu0 %v409
    %483 = vmatprep.subr.mxu0 0.0
    %484 = vmatpush1.msra.mxu0 %v408
    %485 = vmatprep.subr.mxu0 0.0
    %486 = vmatpush1.msra.mxu0 %v407
    %487 = vmatprep.subr.mxu0 0.0
    %488 = vmatpush2.msra.mxu0 %v438
    %489 = vmatprep.subr.mxu0 0.0
    %490 = vmatpush2.msra.mxu0 %v437
    %491 = vmatprep.subr.mxu0 0.0
    %492 = vmatpush2.msra.mxu0 %v436
    %493 = vmatprep.subr.mxu0 0.0
    %494 = vmatpush2.msra.mxu0 %v435
    %495 = vmatprep.subr.mxu0 0.0
    %496 = vmatpush2.msra.mxu0 %v434
    %497 = vmatprep.subr.mxu0 0.0
    %498 = vmatpush2.msra.mxu0 %v433
    %499 = vmatprep.subr.mxu0 0.0
    %500 = vmatpush2.msra.mxu0 %v432
    %501 = vmatprep.subr.mxu0 0.0
    %502 = vmatpush2.msra.mxu0 %v431
    %503 = vmatprep.subr.mxu0 0.0
    %504 = vmatpush2.msra.mxu0 %v430
    %505 = vmatprep.subr.mxu0 0.0
    %506 = vmatpush2.msra.mxu0 %v429
    %507 = vmatprep.subr.mxu0 0.0
    %508 = vmatpush2.msra.mxu0 %v428
    %509 = vmatprep.subr.mxu0 0.0
    %510 = vmatpush2.msra.mxu0 %v427
    %511 = vmatprep.subr.mxu0 0.0
    %512 = vmatpush2.msra.mxu0 %v426
    %513 = vmatprep.subr.mxu0 0.0
    %514 = vmatpush2.msra.mxu0 %v425
    %515 = vmatprep.subr.mxu0 0.0
    %516 = vmatpush2.msra.mxu0 %v424
    %517 = vmatprep.subr.mxu0 0.0
    %518 = vmatpush2.msra.mxu0 %v423
    %519 = vmatprep.mubr.f32.mxu0 %v396
    %520 = vmatmul.mubr.f32.gmra.mxu0 %v395
    %v521 = vpop.f32.mrf.mxu0
    %v522 = vadd.f32 0.0, %v521
    %v523 = vpop.f32.mrf.mxu0
    %524 = vmatprep.mubr.f32.mxu0 %v402
    %525 = vmatmul.mubr.f32.gmra.mxu0 %v401
    %v526 = vpop.f32.mrf.mxu0
    %v527 = vadd.f32 0.0, %v526
    %v528 = vpop.f32.mrf.mxu0
    %529 = vdwg.mxu0
    %530 = vmatprep.subr.mxu0 0.0
    %531 = vmatpush1.msra.mxu0 %v454
    %532 = vmatprep.subr.mxu0 0.0
    %533 = vmatpush1.msra.mxu0 %v453
    %534 = vmatprep.subr.mxu0 0.0
    %535 = vmatpush1.msra.mxu0 %v452
    %536 = vmatprep.subr.mxu0 0.0
    %537 = vmatpush1.msra.mxu0 %v451
    %538 = vmatprep.subr.mxu0 0.0
    %539 = vmatpush1.msra.mxu0 %v450
    %540 = vmatprep.subr.mxu0 0.0
    %541 = vmatpush1.msra.mxu0 %v449
    %542 = vmatprep.subr.mxu0 0.0
    %543 = vmatpush1.msra.mxu0 %v448
    %544 = vmatprep.subr.mxu0 0.0
    %545 = vmatpush1.msra.mxu0 %v447
    %546 = vmatprep.subr.mxu0 0.0
    %547 = vmatpush1.msra.mxu0 %v446
    %548 = vmatprep.subr.mxu0 0.0
    %549 = vmatpush1.msra.mxu0 %v445
    %550 = vmatprep.subr.mxu0 0.0
    %551 = vmatpush1.msra.mxu0 %v444
    %552 = vmatprep.subr.mxu0 0.0
    %553 = vmatpush1.msra.mxu0 %v443
    %554 = vmatprep.subr.mxu0 0.0
    %555 = vmatpush1.msra.mxu0 %v442
    %556 = vmatprep.subr.mxu0 0.0
    %557 = vmatpush1.msra.mxu0 %v441
    %558 = vmatprep.subr.mxu0 0.0
    %559 = vmatpush1.msra.mxu0 %v440
    %560 = vmatprep.subr.mxu0 0.0
    %561 = vmatpush1.msra.mxu0 %v439
    %562 = vmatprep.subr.mxu0 0.0
    %563 = vmatpush2.msra.mxu0 0.0
    %564 = vmatprep.subr.mxu0 0.0
    %565 = vmatpush2.msra.mxu0 0.0
    %566 = vmatprep.subr.mxu0 0.0
    %567 = vmatpush2.msra.mxu0 0.0
    %568 = vmatprep.subr.mxu0 0.0
    %569 = vmatpush2.msra.mxu0 0.0
    %570 = vmatprep.subr.mxu0 0.0
    %571 = vmatpush2.msra.mxu0 0.0
    %572 = vmatprep.subr.mxu0 0.0
    %573 = vmatpush2.msra.mxu0 0.0
    %574 = vmatprep.subr.mxu0 0.0
    %575 = vmatpush2.msra.mxu0 0.0
    %576 = vmatprep.subr.mxu0 0.0
    %577 = vmatpush2.msra.mxu0 0.0
    %578 = vmatprep.subr.mxu0 0.0
    %579 = vmatpush2.msra.mxu0 0.0
    %580 = vmatprep.subr.mxu0 0.0
    %581 = vmatpush2.msra.mxu0 0.0
    %582 = vmatprep.subr.mxu0 0.0
    %583 = vmatpush2.msra.mxu0 0.0
    %584 = vmatprep.subr.mxu0 0.0
    %585 = vmatpush2.msra.mxu0 0.0
    %586 = vmatprep.subr.mxu0 0.0
    %587 = vmatpush2.msra.mxu0 0.0
    %588 = vmatprep.subr.mxu0 0.0
    %589 = vmatpush2.msra.mxu0 0.0
    %590 = vmatprep.subr.mxu0 0.0
    %591 = vmatpush2.msra.mxu0 0.0
    %592 = vmatprep.subr.mxu0 0.0
    %593 = vmatpush2.msra.mxu0 0.0
    %594 = vmatprep.mubr.f32.mxu0 0.0
    %595 = vmatmul.mubr.f32.gmra.mxu0 %v397
    %v596 = vpop.f32.mrf.mxu0
    %v597 = vadd.f32 %v522, %v596
    %v598 = vpop.f32.mrf.mxu0
    %599 = vmatprep.mubr.f32.mxu0 0.0
    %600 = vmatmul.mubr.f32.gmra.mxu0 %v403
    %v601 = vpop.f32.mrf.mxu0
    %v602 = vadd.f32 %v527, %v601
    %v603 = vpop.f32.mrf.mxu0
    %604 = vdwg.mxu0
    %v605 = vadd.f32 %v108, %v597
    %v606 = vadd.f32 %v113, %v602
    %vm607 = vcmp.gt.f32.partialorder %v605, 0.0
    %vm608 = vcmp.gt.f32.partialorder %v606, 0.0
    %v609 = vmul.f32 %v605, 0.2
    %v610 = vmul.f32 %v606, 0.2
    %v611 = vsel %vm607, %v605, %v609
    %v612 = vsel %vm608, %v606, %v610
    %613 = vmatprep.subr.mxu0 0.0
    %614 = vmatpush1.msra.mxu0 %v422
    %615 = vmatprep.subr.mxu0 0.0
    %616 = vmatpush1.msra.mxu0 %v421
    %617 = vmatprep.subr.mxu0 0.0
    %618 = vmatpush1.msra.mxu0 %v420
    %619 = vmatprep.subr.mxu0 0.0
    %620 = vmatpush1.msra.mxu0 %v419
    %621 = vmatprep.subr.mxu0 0.0
    %622 = vmatpush1.msra.mxu0 %v418
    %623 = vmatprep.subr.mxu0 0.0
    %624 = vmatpush1.msra.mxu0 %v417
    %625 = vmatprep.subr.mxu0 0.0
    %626 = vmatpush1.msra.mxu0 %v416
    %627 = vmatprep.subr.mxu0 0.0
    %628 = vmatpush1.msra.mxu0 %v415
    %629 = vmatprep.subr.mxu0 0.0
    %630 = vmatpush1.msra.mxu0 %v414
    %631 = vmatprep.subr.mxu0 0.0
    %632 = vmatpush1.msra.mxu0 %v413
    %633 = vmatprep.subr.mxu0 0.0
    %634 = vmatpush1.msra.mxu0 %v412
    %635 = vmatprep.subr.mxu0 0.0
    %636 = vmatpush1.msra.mxu0 %v411
    %637 = vmatprep.subr.mxu0 0.0
    %638 = vmatpush1.msra.mxu0 %v410
    %639 = vmatprep.subr.mxu0 0.0
    %640 = vmatpush1.msra.mxu0 %v409
    %641 = vmatprep.subr.mxu0 0.0
    %642 = vmatpush1.msra.mxu0 %v408
    %643 = vmatprep.subr.mxu0 0.0
    %644 = vmatpush1.msra.mxu0 %v407
    %645 = vmatprep.subr.mxu0 0.0
    %646 = vmatpush2.msra.mxu0 %v438
    %647 = vmatprep.subr.mxu0 0.0
    %648 = vmatpush2.msra.mxu0 %v437
    %649 = vmatprep.subr.mxu0 0.0
    %650 = vmatpush2.msra.mxu0 %v436
    %651 = vmatprep.subr.mxu0 0.0
    %652 = vmatpush2.msra.mxu0 %v435
    %653 = vmatprep.subr.mxu0 0.0
    %654 = vmatpush2.msra.mxu0 %v434
    %655 = vmatprep.subr.mxu0 0.0
    %656 = vmatpush2.msra.mxu0 %v433
    %657 = vmatprep.subr.mxu0 0.0
    %658 = vmatpush2.msra.mxu0 %v432
    %659 = vmatprep.subr.mxu0 0.0
    %660 = vmatpush2.msra.mxu0 %v431
    %661 = vmatprep.subr.mxu0 0.0
    %662 = vmatpush2.msra.mxu0 %v430
    %663 = vmatprep.subr.mxu0 0.0
    %664 = vmatpush2.msra.mxu0 %v429
    %665 = vmatprep.subr.mxu0 0.0
    %666 = vmatpush2.msra.mxu0 %v428
    %667 = vmatprep.subr.mxu0 0.0
    %668 = vmatpush2.msra.mxu0 %v427
    %669 = vmatprep.subr.mxu0 0.0
    %670 = vmatpush2.msra.mxu0 %v426
    %671 = vmatprep.subr.mxu0 0.0
    %672 = vmatpush2.msra.mxu0 %v425
    %673 = vmatprep.subr.mxu0 0.0
    %674 = vmatpush2.msra.mxu0 %v424
    %675 = vmatprep.subr.mxu0 0.0
    %676 = vmatpush2.msra.mxu0 %v423
    %677 = vmatprep.mubr.f32.mxu0 %v399
    %678 = vmatmul.mubr.f32.gmra.mxu0 %v398
    %v679 = vpop.f32.mrf.mxu0
    %v680 = vadd.f32 0.0, %v679
    %v681 = vpop.f32.mrf.mxu0
    %682 = vmatprep.mubr.f32.mxu0 %v405
    %683 = vmatmul.mubr.f32.gmra.mxu0 %v404
    %v684 = vpop.f32.mrf.mxu0
    %v685 = vadd.f32 0.0, %v684
    %v686 = vpop.f32.mrf.mxu0
    %687 = vdwg.mxu0
    %688 = vmatprep.subr.mxu0 0.0
    %689 = vmatpush1.msra.mxu0 %v454
    %690 = vmatprep.subr.mxu0 0.0
    %691 = vmatpush1.msra.mxu0 %v453
    %692 = vmatprep.subr.mxu0 0.0
    %693 = vmatpush1.msra.mxu0 %v452
    %694 = vmatprep.subr.mxu0 0.0
    %695 = vmatpush1.msra.mxu0 %v451
    %696 = vmatprep.subr.mxu0 0.0
    %697 = vmatpush1.msra.mxu0 %v450
    %698 = vmatprep.subr.mxu0 0.0
    %699 = vmatpush1.msra.mxu0 %v449
    %700 = vmatprep.subr.mxu0 0.0
    %701 = vmatpush1.msra.mxu0 %v448
    %702 = vmatprep.subr.mxu0 0.0
    %703 = vmatpush1.msra.mxu0 %v447
    %704 = vmatprep.subr.mxu0 0.0
    %705 = vmatpush1.msra.mxu0 %v446
    %706 = vmatprep.subr.mxu0 0.0
    %707 = vmatpush1.msra.mxu0 %v445
    %708 = vmatprep.subr.mxu0 0.0
    %709 = vmatpush1.msra.mxu0 %v444
    %710 = vmatprep.subr.mxu0 0.0
    %711 = vmatpush1.msra.mxu0 %v443
    %712 = vmatprep.subr.mxu0 0.0
    %713 = vmatpush1.msra.mxu0 %v442
    %714 = vmatprep.subr.mxu0 0.0
    %715 = vmatpush1.msra.mxu0 %v441
    %716 = vmatprep.subr.mxu0 0.0
    %717 = vmatpush1.msra.mxu0 %v440
    %718 = vmatprep.subr.mxu0 0.0
    %719 = vmatpush1.msra.mxu0 %v439
    %720 = vmatprep.subr.mxu0 0.0
    %721 = vmatpush2.msra.mxu0 0.0
    %722 = vmatprep.subr.mxu0 0.0
    %723 = vmatpush2.msra.mxu0 0.0
    %724 = vmatprep.subr.mxu0 0.0
    %725 = vmatpush2.msra.mxu0 0.0
    %726 = vmatprep.subr.mxu0 0.0
    %727 = vmatpush2.msra.mxu0 0.0
    %728 = vmatprep.subr.mxu0 0.0
    %729 = vmatpush2.msra.mxu0 0.0
    %730 = vmatprep.subr.mxu0 0.0
    %731 = vmatpush2.msra.mxu0 0.0
    %732 = vmatprep.subr.mxu0 0.0
    %733 = vmatpush2.msra.mxu0 0.0
    %734 = vmatprep.subr.mxu0 0.0
    %735 = vmatpush2.msra.mxu0 0.0
    %736 = vmatprep.subr.mxu0 0.0
    %737 = vmatpush2.msra.mxu0 0.0
    %738 = vmatprep.subr.mxu0 0.0
    %739 = vmatpush2.msra.mxu0 0.0
    %740 = vmatprep.subr.mxu0 0.0
    %741 = vmatpush2.msra.mxu0 0.0
    %742 = vmatprep.subr.mxu0 0.0
    %743 = vmatpush2.msra.mxu0 0.0
    %744 = vmatprep.subr.mxu0 0.0
    %745 = vmatpush2.msra.mxu0 0.0
    %746 = vmatprep.subr.mxu0 0.0
    %747 = vmatpush2.msra.mxu0 0.0
    %748 = vmatprep.subr.mxu0 0.0
    %749 = vmatpush2.msra.mxu0 0.0
    %750 = vmatprep.subr.mxu0 0.0
    %751 = vmatpush2.msra.mxu0 0.0
    %752 = vmatprep.mubr.f32.mxu0 0.0
    %753 = vmatmul.mubr.f32.gmra.mxu0 %v400
    %v754 = vpop.f32.mrf.mxu0
    %v755 = vadd.f32 %v680, %v754
    %v756 = vpop.f32.mrf.mxu0
    %757 = vmatprep.mubr.f32.mxu0 0.0
    %758 = vmatmul.mubr.f32.gmra.mxu0 %v406
    %v759 = vpop.f32.mrf.mxu0
    %v760 = vadd.f32 %v685, %v759
    %v761 = vpop.f32.mrf.mxu0
    %762 = vdwg.mxu0
    %v763 = vadd.f32 %v108, %v755
    %v764 = vadd.f32 %v113, %v760
    %vm765 = vcmp.gt.f32.partialorder %v763, 0.0
    %vm766 = vcmp.gt.f32.partialorder %v764, 0.0
    %v767 = vmul.f32 %v763, 0.2
    %v768 = vmul.f32 %v764, 0.2
    %v769 = vsel %vm765, %v763, %v767
    %v770 = vsel %vm766, %v764, %v768
    %773 = vrot.lane.b32.xlu0 %v769, 64
    %v774 = vpop.permute.xlu0 %773
    %775 = vrot.lane.b32.xlu0 %v770, 64
    %v776 = vpop.permute.xlu0 %775
    %vm779 = vcmask 523264
    %v780 = vsel %vm779, %v611, %v774
    %v781 = vsel %vm779, %v612, %v776
    %782 = vst [vmem:[#allocation2] sm:$0xff] %v780
    %783 = vst [vmem:[#allocation2 + $0x8] sm:$0xff] %v781
    // Predicated region
    $region22: #{tpu_custom_call.1} parent=1 // pred_check
      _
    $region23: #{tpu_custom_call.1} parent=1 // pred_check_branch
      %785 = sbr.rel (0) target = $region25
    $region24: #{tpu_custom_call.1} parent=1 // pred_region
      %s787 = ssub.s32 256, 256
      %788 = vsyncadd [#allocation3], %s787
      %s789 = sshll.u32 [#allocation2], 4
      %s790 = int_to_ptr.vmem [resolvable:$true] %s789
      %795 = dma.vmem_to_hbm [thread:$0]  %s790, 256, %s5, [#allocation3], 128, 128, 8
    $region25: #{tpu_custom_call.1} parent=1 // pred_fallthru
      _
    // Predicated region
    $region26: #{tpu_custom_call.1} parent=1 // pred_check
      _
    $region27: #{tpu_custom_call.1} parent=1 // pred_check_branch
      %797 = sbr.rel (0) target = $region29
    $region28: #{tpu_custom_call.1} parent=1 // pred_region
      %798 = dma.done [#allocation3], 256
    $region29: #{tpu_custom_call.1} parent=1 // pred_fallthru
      _
    %799 = vsyncpa [#allocation3], 1

// kernel: tpu_custom_call.1
$region0: #{tpu_custom_call.1}
  #allocation0 [shape = 'u32[]', space=smem, size = 0x4, offset = 0x4, fixed_abs, tag = 'smem constant byte address 0x4 - core index']
  #allocation1 [shape = 'u32[144,128]{1,0:T(1,128)}', space=vmem, size = 0x12000, scoped, tag = 'internal scratch']
  %s0 = inlined_call_operand.vmem [shape: f32[16,32], index: 0, kind: input, shape index: {}]
  %s1 = inlined_call_operand.vmem [shape: f32[32,64], index: 1, kind: input, shape index: {}]
  %s2 = inlined_call_operand.vmem [shape: f32[32,768], index: 2, kind: input, shape index: {}]
  %s3 = inlined_call_operand.vmem [shape: f32[384,64], index: 3, kind: input, shape index: {}]
  %s4 = inlined_call_operand.vmem [shape: f32[1,64], index: 4, kind: input, shape index: {}]
  %s5 = inlined_call_operand.hbm [shape: f32[16,128], index: 5, kind: output, shape index: {}]
  %s6 = sld [smem:[#allocation0]]
  $region30: #{tpu_custom_call.1} parent=0
    _
  %s8 = ssub.s32 1, %s6
  %s9 = scalar_select 0, %s8, %s6
  $region1: #{tpu_custom_call.1} parent=0
    #allocation2 [shape = 'u8[8192]{0}', space=vmem, size = 0x2000, scoped, tag = 'output window, operand 0, single buffered']
    #allocation3 [shape = 's32[1]{0}', space=sflag, size = 0x4, scoped, tag = 'scoped memory for tpu_custom_call.1']
    %10 = vsyncpa [#allocation3], 0
    // Predicated region
    $region2: #{tpu_custom_call.1} parent=1 // pred_check
      _
    $region3: #{tpu_custom_call.1} parent=1 // pred_check_branch
      %12 = sbr.rel (0) target = $region5
    $region4: #{tpu_custom_call.1} parent=1 // pred_region
      _
    $region5: #{tpu_custom_call.1} parent=1 // pred_fallthru
      _
    // Predicated region
    $region6: #{tpu_custom_call.1} parent=1 // pred_check
      _
    $region7: #{tpu_custom_call.1} parent=1 // pred_check_branch
      %14 = sbr.rel (0) target = $region9
    $region8: #{tpu_custom_call.1} parent=1 // pred_region
      _
    $region9: #{tpu_custom_call.1} parent=1 // pred_fallthru
      _
    // Predicated region
    $region10: #{tpu_custom_call.1} parent=1 // pred_check
      _
    $region11: #{tpu_custom_call.1} parent=1 // pred_check_branch
      %16 = sbr.rel (0) target = $region13
    $region12: #{tpu_custom_call.1} parent=1 // pred_region
      _
    $region13: #{tpu_custom_call.1} parent=1 // pred_fallthru
      _
    // Predicated region
    $region14: #{tpu_custom_call.1} parent=1 // pred_check
      _
    $region15: #{tpu_custom_call.1} parent=1 // pred_check_branch
      %18 = sbr.rel (0) target = $region17
    $region16: #{tpu_custom_call.1} parent=1 // pred_region
      _
    $region17: #{tpu_custom_call.1} parent=1 // pred_fallthru
      _
    // Predicated region
    $region18: #{tpu_custom_call.1} parent=1 // pred_check
      _
    $region19: #{tpu_custom_call.1} parent=1 // pred_check_branch
      %20 = sbr.rel (0) target = $region21
    $region20: #{tpu_custom_call.1} parent=1 // pred_region
      _
    $region21: #{tpu_custom_call.1} parent=1 // pred_fallthru
      _
    %v21 = vld [vmem:[%s0] sm:$0xff]
    %v22 = vld [vmem:[%s0 + $0x8] sm:$0xff]
    %v23 = vld [vmem:[%s1] sm:$0xff]
    %v24 = vld [vmem:[%s1 + $0x8] sm:$0xff]
    %v25 = vld [vmem:[%s1 + $0x10] sm:$0xff]
    %v26 = vld [vmem:[%s1 + $0x18] sm:$0xff]
    %v27 = vld [vmem:[%s4] sm:$0x1]
    %v29 = vlaneseq
    %v30 = vshrl.u32 %v29, 7
    %v31 = vsub.s32 0, %v30
    %v32 = vrot.slane %v27, %v31
    %vm34 = vcmask 261120
    %v36 = vsel %vm34, %v21, 0
    %v39 = vsel %vm34, %v22, 0
    %41 = vmatprep.subr.mxu0 0.0
    %42 = vmatpush1.msra.mxu0 0.0
    %43 = vmatprep.subr.mxu0 0.0
    %44 = vmatpush1.msra.mxu0 0.0
    %45 = vmatprep.subr.mxu0 0.0
    %46 = vmatpush1.msra.mxu0 0.0
    %47 = vmatprep.subr.mxu0 0.0
    %48 = vmatpush1.msra.mxu0 0.0
    %49 = vmatprep.subr.mxu0 0.0
    %50 = vmatpush1.msra.mxu0 0.0
    %51 = vmatprep.subr.mxu0 0.0
    %52 = vmatpush1.msra.mxu0 0.0
    %53 = vmatprep.subr.mxu0 0.0
    %54 = vmatpush1.msra.mxu0 0.0
    %55 = vmatprep.subr.mxu0 0.0
    %56 = vmatpush1.msra.mxu0 0.0
    %57 = vmatprep.subr.mxu0 0.0
    %58 = vmatpush1.msra.mxu0 0.0
    %59 = vmatprep.subr.mxu0 0.0
    %60 = vmatpush1.msra.mxu0 0.0
    %61 = vmatprep.subr.mxu0 0.0
    %62 = vmatpush1.msra.mxu0 0.0
    %63 = vmatprep.subr.mxu0 0.0
    %64 = vmatpush1.msra.mxu0 0.0
    %65 = vmatprep.subr.mxu0 0.0
    %66 = vmatpush1.msra.mxu0 %v26
    %67 = vmatprep.subr.mxu0 0.0
    %68 = vmatpush1.msra.mxu0 %v25
    %69 = vmatprep.subr.mxu0 0.0
    %70 = vmatpush1.msra.mxu0 %v24
    %71 = vmatprep.subr.mxu0 0.0
    %72 = vmatpush1.msra.mxu0 %v23
    %73 = vmatprep.subr.mxu0 0.0
    %74 = vmatpush2.msra.mxu0 0.0
    %75 = vmatprep.subr.mxu0 0.0
    %76 = vmatpush2.msra.mxu0 0.0
    %77 = vmatprep.subr.mxu0 0.0
    %78 = vmatpush2.msra.mxu0 0.0
    %79 = vmatprep.subr.mxu0 0.0
    %80 = vmatpush2.msra.mxu0 0.0
    %81 = vmatprep.subr.mxu0 0.0
    %82 = vmatpush2.msra.mxu0 0.0
    %83 = vmatprep.subr.mxu0 0.0
    %84 = vmatpush2.msra.mxu0 0.0
    %85 = vmatprep.subr.mxu0 0.0
    %86 = vmatpush2.msra.mxu0 0.0
    %87 = vmatprep.subr.mxu0 0.0
    %88 = vmatpush2.msra.mxu0 0.0
    %89 = vmatprep.subr.mxu0 0.0
    %90 = vmatpush2.msra.mxu0 0.0
    %91 = vmatprep.subr.mxu0 0.0
    %92 = vmatpush2.msra.mxu0 0.0
    %93 = vmatprep.subr.mxu0 0.0
    %94 = vmatpush2.msra.mxu0 0.0
    %95 = vmatprep.subr.mxu0 0.0
    %96 = vmatpush2.msra.mxu0 0.0
    %97 = vmatprep.subr.mxu0 0.0
    %98 = vmatpush2.msra.mxu0 0.0
    %99 = vmatprep.subr.mxu0 0.0
    %100 = vmatpush2.msra.mxu0 0.0
    %101 = vmatprep.subr.mxu0 0.0
    %102 = vmatpush2.msra.mxu0 0.0
    %103 = vmatprep.subr.mxu0 0.0
    %104 = vmatpush2.msra.mxu0 0.0
    %105 = vmatprep.mubr.f32.mxu0 0.0
    %106 = vmatmul.mubr.f32.gmra.mxu0 %v36
    %v107 = vpop.f32.mrf.mxu0
    %v108 = vadd.f32 %v32, %v107
    %v109 = vpop.f32.mrf.mxu0
    %110 = vmatprep.mubr.f32.mxu0 0.0
    %111 = vmatmul.mubr.f32.gmra.mxu0 %v39
    %v112 = vpop.f32.mrf.mxu0
    %v113 = vadd.f32 %v32, %v112
    %v114 = vpop.f32.mrf.mxu0
    %115 = vdwg.mxu0
    %v116 = vld [vmem:[%s2] sm:$0xff]
    %v117 = vld [vmem:[%s2 + $0x8] sm:$0xff]
    %v118 = vld [vmem:[%s2 + $0x10] sm:$0xff]
    %v119 = vld [vmem:[%s2 + $0x18] sm:$0xff]
    %v120 = vld [vmem:[%s2 + $0x20] sm:$0xff]
    %v121 = vld [vmem:[%s2 + $0x28] sm:$0xff]
    %v122 = vld [vmem:[%s2 + $0x30] sm:$0xff]
    %v123 = vld [vmem:[%s2 + $0x38] sm:$0xff]
    %v124 = vld [vmem:[%s2 + $0x40] sm:$0xff]
    %v125 = vld [vmem:[%s2 + $0x48] sm:$0xff]
    %v126 = vld [vmem:[%s2 + $0x50] sm:$0xff]
    %v127 = vld [vmem:[%s2 + $0x58] sm:$0xff]
    %v128 = vld [vmem:[%s2 + $0x60] sm:$0xff]
    %v129 = vld [vmem:[%s2 + $0x68] sm:$0xff]
    %v130 = vld [vmem:[%s2 + $0x70] sm:$0xff]
    %v131 = vld [vmem:[%s2 + $0x78] sm:$0xff]
    %v132 = vld [vmem:[%s2 + $0x80] sm:$0xff]
    %v133 = vld [vmem:[%s2 + $0x88] sm:$0xff]
    %v134 = vld [vmem:[%s2 + $0x90] sm:$0xff]
    %v135 = vld [vmem:[%s2 + $0x98] sm:$0xff]
    %v136 = vld [vmem:[%s2 + $0xa0] sm:$0xff]
    %v137 = vld [vmem:[%s2 + $0xa8] sm:$0xff]
    %v138 = vld [vmem:[%s2 + $0xb0] sm:$0xff]
    %v139 = vld [vmem:[%s2 + $0xb8] sm:$0xff]
    %140 = vmatprep.subr.mxu0 0.0
    %141 = vmatpush1.msra.mxu0 0.0
    %142 = vmatprep.subr.mxu0 0.0
    %143 = vmatpush1.msra.mxu0 0.0
    %144 = vmatprep.subr.mxu0 0.0
    %145 = vmatpush1.msra.mxu0 0.0
    %146 = vmatprep.subr.mxu0 0.0
    %147 = vmatpush1.msra.mxu0 0.0
    %148 = vmatprep.subr.mxu0 0.0
    %149 = vmatpush1.msra.mxu0 0.0
    %150 = vmatprep.subr.mxu0 0.0
    %151 = vmatpush1.msra.mxu0 0.0
    %152 = vmatprep.subr.mxu0 0.0
    %153 = vmatpush1.msra.mxu0 0.0
    %154 = vmatprep.subr.mxu0 0.0
    %155 = vmatpush1.msra.mxu0 0.0
    %156 = vmatprep.subr.mxu0 0.0
    %157 = vmatpush1.msra.mxu0 0.0
    %158 = vmatprep.subr.mxu0 0.0
    %159 = vmatpush1.msra.mxu0 0.0
    %160 = vmatprep.subr.mxu0 0.0
    %161 = vmatpush1.msra.mxu0 0.0
    %162 = vmatprep.subr.mxu0 0.0
    %163 = vmatpush1.msra.mxu0 0.0
    %164 = vmatprep.subr.mxu0 %v135
    %165 = vmatpush1.msra.mxu0 %v134
    %166 = vmatprep.subr.mxu0 %v129
    %167 = vmatpush1.msra.mxu0 %v128
    %168 = vmatprep.subr.mxu0 %v123
    %169 = vmatpush1.msra.mxu0 %v122
    %170 = vmatprep.subr.mxu0 %v117
    %171 = vmatpush1.msra.mxu0 %v116
    %172 = vmatprep.subr.mxu0 0.0
    %173 = vmatpush2.msra.mxu0 0.0
    %174 = vmatprep.subr.mxu0 0.0
    %175 = vmatpush2.msra.mxu0 0.0
    %176 = vmatprep.subr.mxu0 0.0
    %177 = vmatpush2.msra.mxu0 0.0
    %178 = vmatprep.subr.mxu0 0.0
    %179 = vmatpush2.msra.mxu0 0.0
    %180 = vmatprep.subr.mxu0 0.0
    %181 = vmatpush2.msra.mxu0 0.0
    %182 = vmatprep.subr.mxu0 0.0
    %183 = vmatpush2.msra.mxu0 0.0
    %184 = vmatprep.subr.mxu0 0.0
    %185 = vmatpush2.msra.mxu0 0.0
    %186 = vmatprep.subr.mxu0 0.0
    %187 = vmatpush2.msra.mxu0 0.0
    %188 = vmatprep.subr.mxu0 0.0
    %189 = vmatpush2.msra.mxu0 0.0
    %190 = vmatprep.subr.mxu0 0.0
    %191 = vmatpush2.msra.mxu0 0.0
    %192 = vmatprep.subr.mxu0 0.0
    %193 = vmatpush2.msra.mxu0 0.0
    %194 = vmatprep.subr.mxu0 0.0
    %195 = vmatpush2.msra.mxu0 0.0
    %196 = vmatprep.subr.mxu0 0.0
    %197 = vmatpush2.msra.mxu0 0.0
    %198 = vmatprep.subr.mxu0 0.0
    %199 = vmatpush2.msra.mxu0 0.0
    %200 = vmatprep.subr.mxu0 0.0
    %201 = vmatpush2.msra.mxu0 0.0
    %202 = vmatprep.subr.mxu0 0.0
    %203 = vmatpush2.msra.mxu0 0.0
    %204 = vmatprep.mubr.f32.mxu0 0.0
    %205 = vmatmul.mubr.f32.gmra.mxu0 %v36
    %v206 = vpop.f32.mrf.mxu0
    %v207 = vadd.f32 0.0, %v206
    %v208 = vpop.f32.mrf.mxu0
    %v209 = vadd.f32 0.0, %v208
    %210 = vmatprep.mubr.f32.mxu0 0.0
    %211 = vmatmul.mubr.f32.gmra.mxu0 %v39
    %v212 = vpop.f32.mrf.mxu0
    %v213 = vadd.f32 0.0, %v212
    %v214 = vpop.f32.mrf.mxu0
    %v215 = vadd.f32 0.0, %v214
    %216 = vdwg.mxu0
    %217 = vmatprep.subr.mxu0 0.0
    %218 = vmatpush1.msra.mxu0 0.0
    %219 = vmatprep.subr.mxu0 0.0
    %220 = vmatpush1.msra.mxu0 0.0
    %221 = vmatprep.subr.mxu0 0.0
    %222 = vmatpush1.msra.mxu0 0.0
    %223 = vmatprep.subr.mxu0 0.0
    %224 = vmatpush1.msra.mxu0 0.0
    %225 = vmatprep.subr.mxu0 0.0
    %226 = vmatpush1.msra.mxu0 0.0
    %227 = vmatprep.subr.mxu0 0.0
    %228 = vmatpush1.msra.mxu0 0.0
    %229 = vmatprep.subr.mxu0 0.0
    %230 = vmatpush1.msra.mxu0 0.0
    %231 = vmatprep.subr.mxu0 0.0
    %232 = vmatpush1.msra.mxu0 0.0
    %233 = vmatprep.subr.mxu0 0.0
    %234 = vmatpush1.msra.mxu0 0.0
    %235 = vmatprep.subr.mxu0 0.0
    %236 = vmatpush1.msra.mxu0 0.0
    %237 = vmatprep.subr.mxu0 0.0
    %238 = vmatpush1.msra.mxu0 0.0
    %239 = vmatprep.subr.mxu0 0.0
    %240 = vmatpush1.msra.mxu0 0.0
    %241 = vmatprep.subr.mxu0 %v137
    %242 = vmatpush1.msra.mxu0 %v136
    %243 = vmatprep.subr.mxu0 %v131
    %244 = vmatpush1.msra.mxu0 %v130
    %245 = vmatprep.subr.mxu0 %v125
    %246 = vmatpush1.msra.mxu0 %v124
    %247 = vmatprep.subr.mxu0 %v119
    %248 = vmatpush1.msra.mxu0 %v118
    %249 = vmatprep.subr.mxu0 0.0
    %250 = vmatpush2.msra.mxu0 0.0
    %251 = vmatprep.subr.mxu0 0.0
    %252 = vmatpush2.msra.mxu0 0.0
    %253 = vmatprep.subr.mxu0 0.0
    %254 = vmatpush2.msra.mxu0 0.0
    %255 = vmatprep.subr.mxu0 0.0
    %256 = vmatpush2.msra.mxu0 0.0
    %257 = vmatprep.subr.mxu0 0.0
    %258 = vmatpush2.msra.mxu0 0.0
    %259 = vmatprep.subr.mxu0 0.0
    %260 = vmatpush2.msra.mxu0 0.0
    %261 = vmatprep.subr.mxu0 0.0
    %262 = vmatpush2.msra.mxu0 0.0
    %263 = vmatprep.subr.mxu0 0.0
    %264 = vmatpush2.msra.mxu0 0.0
    %265 = vmatprep.subr.mxu0 0.0
    %266 = vmatpush2.msra.mxu0 0.0
    %267 = vmatprep.subr.mxu0 0.0
    %268 = vmatpush2.msra.mxu0 0.0
    %269 = vmatprep.subr.mxu0 0.0
    %270 = vmatpush2.msra.mxu0 0.0
    %271 = vmatprep.subr.mxu0 0.0
    %272 = vmatpush2.msra.mxu0 0.0
    %273 = vmatprep.subr.mxu0 0.0
    %274 = vmatpush2.msra.mxu0 0.0
    %275 = vmatprep.subr.mxu0 0.0
    %276 = vmatpush2.msra.mxu0 0.0
    %277 = vmatprep.subr.mxu0 0.0
    %278 = vmatpush2.msra.mxu0 0.0
    %279 = vmatprep.subr.mxu0 0.0
    %280 = vmatpush2.msra.mxu0 0.0
    %281 = vmatprep.mubr.f32.mxu0 0.0
    %282 = vmatmul.mubr.f32.gmra.mxu0 %v36
    %v283 = vpop.f32.mrf.mxu0
    %v284 = vadd.f32 0.0, %v283
    %v285 = vpop.f32.mrf.mxu0
    %v286 = vadd.f32 0.0, %v285
    %287 = vmatprep.mubr.f32.mxu0 0.0
    %288 = vmatmul.mubr.f32.gmra.mxu0 %v39
    %v289 = vpop.f32.mrf.mxu0
    %v290 = vadd.f32 0.0, %v289
    %v291 = vpop.f32.mrf.mxu0
    %v292 = vadd.f32 0.0, %v291
    %293 = vdwg.mxu0
    %294 = vmatprep.subr.mxu0 0.0
    %295 = vmatpush1.msra.mxu0 0.0
    %296 = vmatprep.subr.mxu0 0.0
    %297 = vmatpush1.msra.mxu0 0.0
    %298 = vmatprep.subr.mxu0 0.0
    %299 = vmatpush1.msra.mxu0 0.0
    %300 = vmatprep.subr.mxu0 0.0
    %301 = vmatpush1.msra.mxu0 0.0
    %302 = vmatprep.subr.mxu0 0.0
    %303 = vmatpush1.msra.mxu0 0.0
    %304 = vmatprep.subr.mxu0 0.0
    %305 = vmatpush1.msra.mxu0 0.0
    %306 = vmatprep.subr.mxu0 0.0
    %307 = vmatpush1.msra.mxu0 0.0
    %308 = vmatprep.subr.mxu0 0.0
    %309 = vmatpush1.msra.mxu0 0.0
    %310 = vmatprep.subr.mxu0 0.0
    %311 = vmatpush1.msra.mxu0 0.0
    %312 = vmatprep.subr.mxu0 0.0
    %313 = vmatpush1.msra.mxu0 0.0
    %314 = vmatprep.subr.mxu0 0.0
    %315 = vmatpush1.msra.mxu0 0.0
    %316 = vmatprep.subr.mxu0 0.0
    %317 = vmatpush1.msra.mxu0 0.0
    %318 = vmatprep.subr.mxu0 %v139
    %319 = vmatpush1.msra.mxu0 %v138
    %320 = vmatprep.subr.mxu0 %v133
    %321 = vmatpush1.msra.mxu0 %v132
    %322 = vmatprep.subr.mxu0 %v127
    %323 = vmatpush1.msra.mxu0 %v126
    %324 = vmatprep.subr.mxu0 %v121
    %325 = vmatpush1.msra.mxu0 %v120
    %326 = vmatprep.subr.mxu0 0.0
    %327 = vmatpush2.msra.mxu0 0.0
    %328 = vmatprep.subr.mxu0 0.0
    %329 = vmatpush2.msra.mxu0 0.0
    %330 = vmatprep.subr.mxu0 0.0
    %331 = vmatpush2.msra.mxu0 0.0
    %332 = vmatprep.subr.mxu0 0.0
    %333 = vmatpush2.msra.mxu0 0.0
    %334 = vmatprep.subr.mxu0 0.0
    %335 = vmatpush2.msra.mxu0 0.0
    %336 = vmatprep.subr.mxu0 0.0
    %337 = vmatpush2.msra.mxu0 0.0
    %338 = vmatprep.subr.mxu0 0.0
    %339 = vmatpush2.msra.mxu0 0.0
    %340 = vmatprep.subr.mxu0 0.0
    %341 = vmatpush2.msra.mxu0 0.0
    %342 = vmatprep.subr.mxu0 0.0
    %343 = vmatpush2.msra.mxu0 0.0
    %344 = vmatprep.subr.mxu0 0.0
    %345 = vmatpush2.msra.mxu0 0.0
    %346 = vmatprep.subr.mxu0 0.0
    %347 = vmatpush2.msra.mxu0 0.0
    %348 = vmatprep.subr.mxu0 0.0
    %349 = vmatpush2.msra.mxu0 0.0
    %350 = vmatprep.subr.mxu0 0.0
    %351 = vmatpush2.msra.mxu0 0.0
    %352 = vmatprep.subr.mxu0 0.0
    %353 = vmatpush2.msra.mxu0 0.0
    %354 = vmatprep.subr.mxu0 0.0
    %355 = vmatpush2.msra.mxu0 0.0
    %356 = vmatprep.subr.mxu0 0.0
    %357 = vmatpush2.msra.mxu0 0.0
    %358 = vmatprep.mubr.f32.mxu0 0.0
    %359 = vmatmul.mubr.f32.gmra.mxu0 %v36
    %v360 = vpop.f32.mrf.mxu0
    %v361 = vadd.f32 0.0, %v360
    %v362 = vpop.f32.mrf.mxu0
    %v363 = vadd.f32 0.0, %v362
    %364 = vmatprep.mubr.f32.mxu0 0.0
    %365 = vmatmul.mubr.f32.gmra.mxu0 %v39
    %v366 = vpop.f32.mrf.mxu0
    %v367 = vadd.f32 0.0, %v366
    %v368 = vpop.f32.mrf.mxu0
    %v369 = vadd.f32 0.0, %v368
    %370 = vdwg.mxu0
    %vm371 = vcmp.gt.f32.partialorder %v207, 0.0
    %vm372 = vcmp.gt.f32.partialorder %v209, 0.0
    %vm373 = vcmp.gt.f32.partialorder %v284, 0.0
    %vm374 = vcmp.gt.f32.partialorder %v286, 0.0
    %vm375 = vcmp.gt.f32.partialorder %v361, 0.0
    %vm376 = vcmp.gt.f32.partialorder %v363, 0.0
    %vm377 = vcmp.gt.f32.partialorder %v213, 0.0
    %vm378 = vcmp.gt.f32.partialorder %v215, 0.0
    %vm379 = vcmp.gt.f32.partialorder %v290, 0.0
    %vm380 = vcmp.gt.f32.partialorder %v292, 0.0
    %vm381 = vcmp.gt.f32.partialorder %v367, 0.0
    %vm382 = vcmp.gt.f32.partialorder %v369, 0.0
    %v383 = vmul.f32 %v207, 0.2
    %v384 = vmul.f32 %v209, 0.2
    %v385 = vmul.f32 %v284, 0.2
    %v386 = vmul.f32 %v286, 0.2
    %v387 = vmul.f32 %v361, 0.2
    %v388 = vmul.f32 %v363, 0.2
    %v389 = vmul.f32 %v213, 0.2
    %v390 = vmul.f32 %v215, 0.2
    %v391 = vmul.f32 %v290, 0.2
    %v392 = vmul.f32 %v292, 0.2
    %v393 = vmul.f32 %v367, 0.2
    %v394 = vmul.f32 %v369, 0.2
    %v395 = vsel %vm371, %v207, %v383
    %v396 = vsel %vm372, %v209, %v384
    %v397 = vsel %vm373, %v284, %v385
    %v398 = vsel %vm374, %v286, %v386
    %v399 = vsel %vm375, %v361, %v387
    %v400 = vsel %vm376, %v363, %v388
    %v401 = vsel %vm377, %v213, %v389
    %v402 = vsel %vm378, %v215, %v390
    %v403 = vsel %vm379, %v290, %v391
    %v404 = vsel %vm380, %v292, %v392
    %v405 = vsel %vm381, %v367, %v393
    %v406 = vsel %vm382, %v369, %v394
    %v407 = vld [vmem:[%s3] sm:$0xff]
    %v408 = vld [vmem:[%s3 + $0x8] sm:$0xff]
    %v409 = vld [vmem:[%s3 + $0x10] sm:$0xff]
    %v410 = vld [vmem:[%s3 + $0x18] sm:$0xff]
    %v411 = vld [vmem:[%s3 + $0x20] sm:$0xff]
    %v412 = vld [vmem:[%s3 + $0x28] sm:$0xff]
    %v413 = vld [vmem:[%s3 + $0x30] sm:$0xff]
    %v414 = vld [vmem:[%s3 + $0x38] sm:$0xff]
    %v415 = vld [vmem:[%s3 + $0x40] sm:$0xff]
    %v416 = vld [vmem:[%s3 + $0x48] sm:$0xff]
    %v417 = vld [vmem:[%s3 + $0x50] sm:$0xff]
    %v418 = vld [vmem:[%s3 + $0x58] sm:$0xff]
    %v419 = vld [vmem:[%s3 + $0x60] sm:$0xff]
    %v420 = vld [vmem:[%s3 + $0x68] sm:$0xff]
    %v421 = vld [vmem:[%s3 + $0x70] sm:$0xff]
    %v422 = vld [vmem:[%s3 + $0x78] sm:$0xff]
    %v423 = vld [vmem:[%s3 + $0x80] sm:$0xff]
    %v424 = vld [vmem:[%s3 + $0x88] sm:$0xff]
    %v425 = vld [vmem:[%s3 + $0x90] sm:$0xff]
    %v426 = vld [vmem:[%s3 + $0x98] sm:$0xff]
    %v427 = vld [vmem:[%s3 + $0xa0] sm:$0xff]
    %v428 = vld [vmem:[%s3 + $0xa8] sm:$0xff]
    %v429 = vld [vmem:[%s3 + $0xb0] sm:$0xff]
    %v430 = vld [vmem:[%s3 + $0xb8] sm:$0xff]
    %v431 = vld [vmem:[%s3 + $0xc0] sm:$0xff]
    %v432 = vld [vmem:[%s3 + $0xc8] sm:$0xff]
    %v433 = vld [vmem:[%s3 + $0xd0] sm:$0xff]
    %v434 = vld [vmem:[%s3 + $0xd8] sm:$0xff]
    %v435 = vld [vmem:[%s3 + $0xe0] sm:$0xff]
    %v436 = vld [vmem:[%s3 + $0xe8] sm:$0xff]
    %v437 = vld [vmem:[%s3 + $0xf0] sm:$0xff]
    %v438 = vld [vmem:[%s3 + $0xf8] sm:$0xff]
    %v439 = vld [vmem:[%s3 + $0x100] sm:$0xff]
    %v440 = vld [vmem:[%s3 + $0x108] sm:$0xff]
    %v441 = vld [vmem:[%s3 + $0x110] sm:$0xff]
    %v442 = vld [vmem:[%s3 + $0x118] sm:$0xff]
    %v443 = vld [vmem:[%s3 + $0x120] sm:$0xff]
    %v444 = vld [vmem:[%s3 + $0x128] sm:$0xff]
    %v445 = vld [vmem:[%s3 + $0x130] sm:$0xff]
    %v446 = vld [vmem:[%s3 + $0x138] sm:$0xff]
    %v447 = vld [vmem:[%s3 + $0x140] sm:$0xff]
    %v448 = vld [vmem:[%s3 + $0x148] sm:$0xff]
    %v449 = vld [vmem:[%s3 + $0x150] sm:$0xff]
    %v450 = vld [vmem:[%s3 + $0x158] sm:$0xff]
    %v451 = vld [vmem:[%s3 + $0x160] sm:$0xff]
    %v452 = vld [vmem:[%s3 + $0x168] sm:$0xff]
    %v453 = vld [vmem:[%s3 + $0x170] sm:$0xff]
    %v454 = vld [vmem:[%s3 + $0x178] sm:$0xff]
    %455 = vmatprep.subr.mxu0 0.0
    %456 = vmatpush1.msra.mxu0 %v422
    %457 = vmatprep.subr.mxu0 0.0
    %458 = vmatpush1.msra.mxu0 %v421
    %459 = vmatprep.subr.mxu0 0.0
    %460 = vmatpush1.msra.mxu0 %v420
    %461 = vmatprep.subr.mxu0 0.0
    %462 = vmatpush1.msra.mxu0 %v419
    %463 = vmatprep.subr.mxu0 0.0
    %464 = vmatpush1.msra.mxu0 %v418
    %465 = vmatprep.subr.mxu0 0.0
    %466 = vmatpush1.msra.mxu0 %v417
    %467 = vmatprep.subr.mxu0 0.0
    %468 = vmatpush1.msra.mxu0 %v416
    %469 = vmatprep.subr.mxu0 0.0
    %470 = vmatpush1.msra.mxu0 %v415
    %471 = vmatprep.subr.mxu0 0.0
    %472 = vmatpush1.msra.mxu0 %v414
    %473 = vmatprep.subr.mxu0 0.0
    %474 = vmatpush1.msra.mxu0 %v413
    %475 = vmatprep.subr.mxu0 0.0
    %476 = vmatpush1.msra.mxu0 %v412
    %477 = vmatprep.subr.mxu0 0.0
    %478 = vmatpush1.msra.mxu0 %v411
    %479 = vmatprep.subr.mxu0 0.0
    %480 = vmatpush1.msra.mxu0 %v410
    %481 = vmatprep.subr.mxu0 0.0
    %482 = vmatpush1.msra.mxu0 %v409
    %483 = vmatprep.subr.mxu0 0.0
    %484 = vmatpush1.msra.mxu0 %v408
    %485 = vmatprep.subr.mxu0 0.0
    %486 = vmatpush1.msra.mxu0 %v407
    %487 = vmatprep.subr.mxu0 0.0
    %488 = vmatpush2.msra.mxu0 %v438
    %489 = vmatprep.subr.mxu0 0.0
    %490 = vmatpush2.msra.mxu0 %v437
    %491 = vmatprep.subr.mxu0 0.0
    %492 = vmatpush2.msra.mxu0 %v436
    %493 = vmatprep.subr.mxu0 0.0
    %494 = vmatpush2.msra.mxu0 %v435
    %495 = vmatprep.subr.mxu0 0.0
    %496 = vmatpush2.msra.mxu0 %v434
    %497 = vmatprep.subr.mxu0 0.0
    %498 = vmatpush2.msra.mxu0 %v433
    %499 = vmatprep.subr.mxu0 0.0
    %500 = vmatpush2.msra.mxu0 %v432
    %501 = vmatprep.subr.mxu0 0.0
    %502 = vmatpush2.msra.mxu0 %v431
    %503 = vmatprep.subr.mxu0 0.0
    %504 = vmatpush2.msra.mxu0 %v430
    %505 = vmatprep.subr.mxu0 0.0
    %506 = vmatpush2.msra.mxu0 %v429
    %507 = vmatprep.subr.mxu0 0.0
    %508 = vmatpush2.msra.mxu0 %v428
    %509 = vmatprep.subr.mxu0 0.0
    %510 = vmatpush2.msra.mxu0 %v427
    %511 = vmatprep.subr.mxu0 0.0
    %512 = vmatpush2.msra.mxu0 %v426
    %513 = vmatprep.subr.mxu0 0.0
    %514 = vmatpush2.msra.mxu0 %v425
    %515 = vmatprep.subr.mxu0 0.0
    %516 = vmatpush2.msra.mxu0 %v424
    %517 = vmatprep.subr.mxu0 0.0
    %518 = vmatpush2.msra.mxu0 %v423
    %519 = vmatprep.mubr.f32.mxu0 %v396
    %520 = vmatmul.mubr.f32.gmra.mxu0 %v395
    %v521 = vpop.f32.mrf.mxu0
    %v522 = vadd.f32 0.0, %v521
    %v523 = vpop.f32.mrf.mxu0
    %524 = vmatprep.mubr.f32.mxu0 %v402
    %525 = vmatmul.mubr.f32.gmra.mxu0 %v401
    %v526 = vpop.f32.mrf.mxu0
    %v527 = vadd.f32 0.0, %v526
    %v528 = vpop.f32.mrf.mxu0
    %529 = vdwg.mxu0
    %530 = vmatprep.subr.mxu0 0.0
    %531 = vmatpush1.msra.mxu0 %v454
    %532 = vmatprep.subr.mxu0 0.0
    %533 = vmatpush1.msra.mxu0 %v453
    %534 = vmatprep.subr.mxu0 0.0
    %535 = vmatpush1.msra.mxu0 %v452
    %536 = vmatprep.subr.mxu0 0.0
    %537 = vmatpush1.msra.mxu0 %v451
    %538 = vmatprep.subr.mxu0 0.0
    %539 = vmatpush1.msra.mxu0 %v450
    %540 = vmatprep.subr.mxu0 0.0
    %541 = vmatpush1.msra.mxu0 %v449
    %542 = vmatprep.subr.mxu0 0.0
    %543 = vmatpush1.msra.mxu0 %v448
    %544 = vmatprep.subr.mxu0 0.0
    %545 = vmatpush1.msra.mxu0 %v447
    %546 = vmatprep.subr.mxu0 0.0
    %547 = vmatpush1.msra.mxu0 %v446
    %548 = vmatprep.subr.mxu0 0.0
    %549 = vmatpush1.msra.mxu0 %v445
    %550 = vmatprep.subr.mxu0 0.0
    %551 = vmatpush1.msra.mxu0 %v444
    %552 = vmatprep.subr.mxu0 0.0
    %553 = vmatpush1.msra.mxu0 %v443
    %554 = vmatprep.subr.mxu0 0.0
    %555 = vmatpush1.msra.mxu0 %v442
    %556 = vmatprep.subr.mxu0 0.0
    %557 = vmatpush1.msra.mxu0 %v441
    %558 = vmatprep.subr.mxu0 0.0
    %559 = vmatpush1.msra.mxu0 %v440
    %560 = vmatprep.subr.mxu0 0.0
    %561 = vmatpush1.msra.mxu0 %v439
    %562 = vmatprep.subr.mxu0 0.0
    %563 = vmatpush2.msra.mxu0 0.0
    %564 = vmatprep.subr.mxu0 0.0
    %565 = vmatpush2.msra.mxu0 0.0
    %566 = vmatprep.subr.mxu0 0.0
    %567 = vmatpush2.msra.mxu0 0.0
    %568 = vmatprep.subr.mxu0 0.0
    %569 = vmatpush2.msra.mxu0 0.0
    %570 = vmatprep.subr.mxu0 0.0
    %571 = vmatpush2.msra.mxu0 0.0
    %572 = vmatprep.subr.mxu0 0.0
    %573 = vmatpush2.msra.mxu0 0.0
    %574 = vmatprep.subr.mxu0 0.0
    %575 = vmatpush2.msra.mxu0 0.0
    %576 = vmatprep.subr.mxu0 0.0
    %577 = vmatpush2.msra.mxu0 0.0
    %578 = vmatprep.subr.mxu0 0.0
    %579 = vmatpush2.msra.mxu0 0.0
    %580 = vmatprep.subr.mxu0 0.0
    %581 = vmatpush2.msra.mxu0 0.0
    %582 = vmatprep.subr.mxu0 0.0
    %583 = vmatpush2.msra.mxu0 0.0
    %584 = vmatprep.subr.mxu0 0.0
    %585 = vmatpush2.msra.mxu0 0.0
    %586 = vmatprep.subr.mxu0 0.0
    %587 = vmatpush2.msra.mxu0 0.0
    %588 = vmatprep.subr.mxu0 0.0
    %589 = vmatpush2.msra.mxu0 0.0
    %590 = vmatprep.subr.mxu0 0.0
    %591 = vmatpush2.msra.mxu0 0.0
    %592 = vmatprep.subr.mxu0 0.0
    %593 = vmatpush2.msra.mxu0 0.0
    %594 = vmatprep.mubr.f32.mxu0 0.0
    %595 = vmatmul.mubr.f32.gmra.mxu0 %v397
    %v596 = vpop.f32.mrf.mxu0
    %v597 = vadd.f32 %v522, %v596
    %v598 = vpop.f32.mrf.mxu0
    %599 = vmatprep.mubr.f32.mxu0 0.0
    %600 = vmatmul.mubr.f32.gmra.mxu0 %v403
    %v601 = vpop.f32.mrf.mxu0
    %v602 = vadd.f32 %v527, %v601
    %v603 = vpop.f32.mrf.mxu0
    %604 = vdwg.mxu0
    %v605 = vadd.f32 %v108, %v597
    %v606 = vadd.f32 %v113, %v602
    %vm607 = vcmp.gt.f32.partialorder %v605, 0.0
    %vm608 = vcmp.gt.f32.partialorder %v606, 0.0
    %v609 = vmul.f32 %v605, 0.2
    %v610 = vmul.f32 %v606, 0.2
    %v611 = vsel %vm607, %v605, %v609
    %v612 = vsel %vm608, %v606, %v610
    %613 = vmatprep.subr.mxu0 0.0
    %614 = vmatpush1.msra.mxu0 %v422
    %615 = vmatprep.subr.mxu0 0.0
    %616 = vmatpush1.msra.mxu0 %v421
    %617 = vmatprep.subr.mxu0 0.0
    %618 = vmatpush1.msra.mxu0 %v420
    %619 = vmatprep.subr.mxu0 0.0
    %620 = vmatpush1.msra.mxu0 %v419
    %621 = vmatprep.subr.mxu0 0.0
    %622 = vmatpush1.msra.mxu0 %v418
    %623 = vmatprep.subr.mxu0 0.0
    %624 = vmatpush1.msra.mxu0 %v417
    %625 = vmatprep.subr.mxu0 0.0
    %626 = vmatpush1.msra.mxu0 %v416
    %627 = vmatprep.subr.mxu0 0.0
    %628 = vmatpush1.msra.mxu0 %v415
    %629 = vmatprep.subr.mxu0 0.0
    %630 = vmatpush1.msra.mxu0 %v414
    %631 = vmatprep.subr.mxu0 0.0
    %632 = vmatpush1.msra.mxu0 %v413
    %633 = vmatprep.subr.mxu0 0.0
    %634 = vmatpush1.msra.mxu0 %v412
    %635 = vmatprep.subr.mxu0 0.0
    %636 = vmatpush1.msra.mxu0 %v411
    %637 = vmatprep.subr.mxu0 0.0
    %638 = vmatpush1.msra.mxu0 %v410
    %639 = vmatprep.subr.mxu0 0.0
    %640 = vmatpush1.msra.mxu0 %v409
    %641 = vmatprep.subr.mxu0 0.0
    %642 = vmatpush1.msra.mxu0 %v408
    %643 = vmatprep.subr.mxu0 0.0
    %644 = vmatpush1.msra.mxu0 %v407
    %645 = vmatprep.subr.mxu0 0.0
    %646 = vmatpush2.msra.mxu0 %v438
    %647 = vmatprep.subr.mxu0 0.0
    %648 = vmatpush2.msra.mxu0 %v437
    %649 = vmatprep.subr.mxu0 0.0
    %650 = vmatpush2.msra.mxu0 %v436
    %651 = vmatprep.subr.mxu0 0.0
    %652 = vmatpush2.msra.mxu0 %v435
    %653 = vmatprep.subr.mxu0 0.0
    %654 = vmatpush2.msra.mxu0 %v434
    %655 = vmatprep.subr.mxu0 0.0
    %656 = vmatpush2.msra.mxu0 %v433
    %657 = vmatprep.subr.mxu0 0.0
    %658 = vmatpush2.msra.mxu0 %v432
    %659 = vmatprep.subr.mxu0 0.0
    %660 = vmatpush2.msra.mxu0 %v431
    %661 = vmatprep.subr.mxu0 0.0
    %662 = vmatpush2.msra.mxu0 %v430
    %663 = vmatprep.subr.mxu0 0.0
    %664 = vmatpush2.msra.mxu0 %v429
    %665 = vmatprep.subr.mxu0 0.0
    %666 = vmatpush2.msra.mxu0 %v428
    %667 = vmatprep.subr.mxu0 0.0
    %668 = vmatpush2.msra.mxu0 %v427
    %669 = vmatprep.subr.mxu0 0.0
    %670 = vmatpush2.msra.mxu0 %v426
    %671 = vmatprep.subr.mxu0 0.0
    %672 = vmatpush2.msra.mxu0 %v425
    %673 = vmatprep.subr.mxu0 0.0
    %674 = vmatpush2.msra.mxu0 %v424
    %675 = vmatprep.subr.mxu0 0.0
    %676 = vmatpush2.msra.mxu0 %v423
    %677 = vmatprep.mubr.f32.mxu0 %v399
    %678 = vmatmul.mubr.f32.gmra.mxu0 %v398
    %v679 = vpop.f32.mrf.mxu0
    %v680 = vadd.f32 0.0, %v679
    %v681 = vpop.f32.mrf.mxu0
    %682 = vmatprep.mubr.f32.mxu0 %v405
    %683 = vmatmul.mubr.f32.gmra.mxu0 %v404
    %v684 = vpop.f32.mrf.mxu0
    %v685 = vadd.f32 0.0, %v684
    %v686 = vpop.f32.mrf.mxu0
    %687 = vdwg.mxu0
    %688 = vmatprep.subr.mxu0 0.0
    %689 = vmatpush1.msra.mxu0 %v454
    %690 = vmatprep.subr.mxu0 0.0
    %691 = vmatpush1.msra.mxu0 %v453
    %692 = vmatprep.subr.mxu0 0.0
    %693 = vmatpush1.msra.mxu0 %v452
    %694 = vmatprep.subr.mxu0 0.0
    %695 = vmatpush1.msra.mxu0 %v451
    %696 = vmatprep.subr.mxu0 0.0
    %697 = vmatpush1.msra.mxu0 %v450
    %698 = vmatprep.subr.mxu0 0.0
    %699 = vmatpush1.msra.mxu0 %v449
    %700 = vmatprep.subr.mxu0 0.0
    %701 = vmatpush1.msra.mxu0 %v448
    %702 = vmatprep.subr.mxu0 0.0
    %703 = vmatpush1.msra.mxu0 %v447
    %704 = vmatprep.subr.mxu0 0.0
    %705 = vmatpush1.msra.mxu0 %v446
    %706 = vmatprep.subr.mxu0 0.0
    %707 = vmatpush1.msra.mxu0 %v445
    %708 = vmatprep.subr.mxu0 0.0
    %709 = vmatpush1.msra.mxu0 %v444
    %710 = vmatprep.subr.mxu0 0.0
    %711 = vmatpush1.msra.mxu0 %v443
    %712 = vmatprep.subr.mxu0 0.0
    %713 = vmatpush1.msra.mxu0 %v442
    %714 = vmatprep.subr.mxu0 0.0
    %715 = vmatpush1.msra.mxu0 %v441
    %716 = vmatprep.subr.mxu0 0.0
    %717 = vmatpush1.msra.mxu0 %v440
    %718 = vmatprep.subr.mxu0 0.0
    %719 = vmatpush1.msra.mxu0 %v439
    %720 = vmatprep.subr.mxu0 0.0
    %721 = vmatpush2.msra.mxu0 0.0
    %722 = vmatprep.subr.mxu0 0.0
    %723 = vmatpush2.msra.mxu0 0.0
    %724 = vmatprep.subr.mxu0 0.0
    %725 = vmatpush2.msra.mxu0 0.0
    %726 = vmatprep.subr.mxu0 0.0
    %727 = vmatpush2.msra.mxu0 0.0
    %728 = vmatprep.subr.mxu0 0.0
    %729 = vmatpush2.msra.mxu0 0.0
    %730 = vmatprep.subr.mxu0 0.0
    %731 = vmatpush2.msra.mxu0 0.0
    %732 = vmatprep.subr.mxu0 0.0
    %733 = vmatpush2.msra.mxu0 0.0
    %734 = vmatprep.subr.mxu0 0.0
    %735 = vmatpush2.msra.mxu0 0.0
    %736 = vmatprep.subr.mxu0 0.0
    %737 = vmatpush2.msra.mxu0 0.0
    %738 = vmatprep.subr.mxu0 0.0
    %739 = vmatpush2.msra.mxu0 0.0
    %740 = vmatprep.subr.mxu0 0.0
    %741 = vmatpush2.msra.mxu0 0.0
    %742 = vmatprep.subr.mxu0 0.0
    %743 = vmatpush2.msra.mxu0 0.0
    %744 = vmatprep.subr.mxu0 0.0
    %745 = vmatpush2.msra.mxu0 0.0
    %746 = vmatprep.subr.mxu0 0.0
    %747 = vmatpush2.msra.mxu0 0.0
    %748 = vmatprep.subr.mxu0 0.0
    %749 = vmatpush2.msra.mxu0 0.0
    %750 = vmatprep.subr.mxu0 0.0
    %751 = vmatpush2.msra.mxu0 0.0
    %752 = vmatprep.mubr.f32.mxu0 0.0
    %753 = vmatmul.mubr.f32.gmra.mxu0 %v400
    %v754 = vpop.f32.mrf.mxu0
    %v755 = vadd.f32 %v680, %v754
    %v756 = vpop.f32.mrf.mxu0
    %757 = vmatprep.mubr.f32.mxu0 0.0
    %758 = vmatmul.mubr.f32.gmra.mxu0 %v406
    %v759 = vpop.f32.mrf.mxu0
    %v760 = vadd.f32 %v685, %v759
    %v761 = vpop.f32.mrf.mxu0
    %762 = vdwg.mxu0
    %v763 = vadd.f32 %v108, %v755
    %v764 = vadd.f32 %v113, %v760
    %vm765 = vcmp.gt.f32.partialorder %v763, 0.0
    %vm766 = vcmp.gt.f32.partialorder %v764, 0.0
    %v767 = vmul.f32 %v763, 0.2
    %v768 = vmul.f32 %v764, 0.2
    %v769 = vsel %vm765, %v763, %v767
    %v770 = vsel %vm766, %v764, %v768
    %773 = vrot.lane.b32.xlu0 %v769, 64
    %v774 = vpop.permute.xlu0 %773
    %775 = vrot.lane.b32.xlu0 %v770, 64
    %v776 = vpop.permute.xlu0 %775
    %vm779 = vcmask 523264
    %v780 = vsel %vm779, %v611, %v774
    %v781 = vsel %vm779, %v612, %v776
    %782 = vst [vmem:[#allocation2] sm:$0xff] %v780
    %783 = vst [vmem:[#allocation2 + $0x8] sm:$0xff] %v781
    // Predicated region
    $region22: #{tpu_custom_call.1} parent=1 // pred_check
      _
    $region23: #{tpu_custom_call.1} parent=1 // pred_check_branch
      %785 = sbr.rel (0) target = $region25
    $region24: #{tpu_custom_call.1} parent=1 // pred_region
      %s787 = ssub.s32 256, 256
      %788 = vsyncadd [#allocation3], %s787
      %s789 = sshll.u32 [#allocation2], 4
      %s790 = int_to_ptr.vmem [resolvable:$true] %s789
      %795 = dma.vmem_to_hbm [thread:$0]  %s790, 256, %s5, [#allocation3], 128, 128, 8
    $region25: #{tpu_custom_call.1} parent=1 // pred_fallthru
      _
    // Predicated region
    $region26: #{tpu_custom_call.1} parent=1 // pred_check
      _
    $region27: #{tpu_custom_call.1} parent=1 // pred_check_branch
      %797 = sbr.rel (0) target = $region29
    $region28: #{tpu_custom_call.1} parent=1 // pred_region
      %798 = dma.done [#allocation3], 256
    $region29: #{tpu_custom_call.1} parent=1 // pred_fallthru
      _
    %799 = vsyncpa [#allocation3], 1

</llo_original>
